<compile_context>
chip_gen: v5e
topology: v5e:2x2
jax: 0.10.0
libtpu: 0.0.40
codegen_flags: <defaults>
</compile_context>

<pallas_src>
import functools

import jax
import jax.numpy as jnp
from jax.experimental import pallas as pl
from jax.experimental.pallas import tpu as pltpu

THRESH = 1.0


def snn_kernel(x_ref,
               w1_ref, b1_ref, w2_ref, b2_ref, w3_ref, b3_ref, w4_ref, b4_ref,
               spk_ref, mem4_ref,
               *, beta, num_steps, b_pad):
    T, B = num_steps, b_pad

    def layer(inp_2d, w_ref, b_ref):
        """Whole-time-range linear layer followed by the sequential LIF scan.

        inp_2d : (T*B, K) bf16, rows ordered [t=0 batch rows, t=1 batch rows, ...]
        returns: spikes (T*B, M) bf16 (exact 0/1), final membrane (B, M) f32.
        """
        w = w_ref[...]                      # (K, M) bf16
        b = b_ref[...]                      # (1, M) f32
        # ONE time-batched matmul for the whole recurrence (MXU, f32 acc);
        # bias broadcast happens once per layer, outside the time loop.
        cur = jnp.dot(inp_2d, w, preferred_element_type=jnp.float32) + b
        M = w.shape[1]
        mem = jnp.zeros((B, M), jnp.float32)
        spk_steps = []
        # T is small and static -> fully unrolled elementwise scan (VPU only).
        for t in range(T):
            cur_t = cur[t * B:(t + 1) * B, :]                 # static 8-row slice
            reset = (mem > THRESH).astype(jnp.float32)        # spike of prev step
            mem = beta * mem + cur_t - reset * THRESH         # subtract reset
            spk_steps.append((mem > THRESH).astype(jnp.bfloat16))
        return jnp.concatenate(spk_steps, axis=0), mem

    r1, _ = layer(x_ref[...], w1_ref, b1_ref)   # (T*B, H) bf16
    r2, _ = layer(r1, w2_ref, b2_ref)
    r3, _ = layer(r2, w3_ref, b3_ref)
    r4, mem4 = layer(r3, w4_ref, b4_ref)

    # Single lane-dense (T*B, 3H+O) = (64, 128) bf16 store of all four records.
    spk_ref[...] = jnp.concatenate([r1, r2, r3, r4], axis=-1)
    mem4_ref[...] = mem4


def net_small_forward(x, params, *, beta):
    """x: (batch, num_steps, num_inputs) float32 (PyTorch-style layout)."""
    B, T, N = x.shape
    w1, b1, w2, b2, w3, b3, w4, b4 = params
    H = w1.shape[1]
    O = w4.shape[1]
    P = 3 * H + O                                      # packed spike width

    # Pad batch to the sublane tile (>=8 rows), go time-major, flatten (T*B, N).
    B_pad = max(8, ((B + 7) // 8) * 8)
    x_tm = jnp.transpose(x, (1, 0, 2))                 # (T, B, N)
    if B_pad != B:
        x_tm = jnp.pad(x_tm, ((0, 0), (0, B_pad - B), (0, 0)))
    x2d = x_tm.reshape(T * B_pad, N).astype(jnp.bfloat16)

    # bf16 matmul operands (f32 accumulation inside the kernel).
    w1b, w2b, w3b, w4b = (w.astype(jnp.bfloat16) for w in (w1, w2, w3, w4))

    vmem = lambda: pl.BlockSpec(memory_space=pltpu.MemorySpace.VMEM)

    out_shapes = (
        jax.ShapeDtypeStruct((T * B_pad, P), jnp.bfloat16),  # packed spk1..spk4
        jax.ShapeDtypeStruct((B_pad, O), jnp.float32),       # final mem4
    )

    packed, mem4 = pl.pallas_call(
        functools.partial(snn_kernel, beta=beta, num_steps=T, b_pad=B_pad),
        out_shape=out_shapes,
        in_specs=[vmem() for _ in range(9)],
        out_specs=(vmem(), vmem()),
    )(x2d, w1b, b1, w2b, b2, w3b, b3, w4b, b4)

    packed = packed.reshape(T, B_pad, P).astype(jnp.float32)
    spk1 = packed[:, :B, 0:H]
    spk2 = packed[:, :B, H:2 * H]
    spk3 = packed[:, :B, 2 * H:3 * H]
    spk4 = packed[:, :B, 3 * H:3 * H + O]
    return [spk1, spk2, spk3, spk4], mem4[:B]


def net_small_reference(x, params, *, beta):
    """Pure-JAX reference mirroring the original PyTorch/snnTorch per-step loop
    (same bf16 matmul operands / f32 accumulation as the kernel).  Its loop is
    per-step, so it independently checks the kernel's layer-by-layer batching."""
    B, T, N = x.shape
    w1, b1, w2, b2, w3, b3, w4, b4 = params
    H = w1.shape[1]
    O = w4.shape[1]
    xb = x.astype(jnp.bfloat16)
    w1b, w2b, w3b, w4b = (w.astype(jnp.bfloat16) for w in (w1, w2, w3, w4))

    mem1 = jnp.zeros((B, H)); mem2 = jnp.zeros((B, H))
    mem3 = jnp.zeros((B, H)); mem4 = jnp.zeros((B, O))

    def lif(cur, mem):
        reset = (mem > THRESH).astype(jnp.float32)
        mem_new = beta * mem + cur - reset * THRESH
        spk = (mem_new > THRESH).astype(jnp.float32)
        return spk, mem_new

    def mm(a, w):
        return jnp.dot(a.astype(jnp.bfloat16), w,
                       preferred_element_type=jnp.float32)

    r1, r2, r3, r4 = [], [], [], []
    for t in range(T):
        xt = xb[:, t, :]
        s1, mem1 = lif(mm(xt, w1b) + b1[0], mem1); r1.append(s1)
        s2, mem2 = lif(mm(s1, w2b) + b2[0], mem2); r2.append(s2)
        s3, mem3 = lif(mm(s2, w3b) + b3[0], mem3); r3.append(s3)
        s4, mem4 = lif(mm(s3, w4b) + b4[0], mem4); r4.append(s4)
    return [jnp.stack(r) for r in (r1, r2, r3, r4)], mem4


def init_linear(key, fan_in, fan_out):
    """PyTorch nn.Linear default init: U(-1/sqrt(fan_in), 1/sqrt(fan_in)).
    Returns W^T of shape (fan_in, fan_out) and bias of shape (1, fan_out)."""
    kw, kb = jax.random.split(key)
    bound = 1.0 / jnp.sqrt(fan_in)
    wT = jax.random.uniform(kw, (fan_in, fan_out), jnp.float32, -bound, bound)
    b = jax.random.uniform(kb, (1, fan_out), jnp.float32, -bound, bound)
    return wT, b


if __name__ == "__main__":
    # Small shapes consistent with the module's forward.
    batch_size = 2
    num_steps = 8
    num_inputs = 16
    num_hidden = 32
    num_outputs = 32   # fc4 is Linear(num_outputs, num_outputs) applied to spk3
    beta = 0.9

    key = jax.random.PRNGKey(0)
    kx, k1, k2, k3, k4 = jax.random.split(key, 5)

    # Amplify the input so spikes actually fire (cur must exceed threshold=1).
    x = 4.0 * jax.random.normal(kx, (batch_size, num_steps, num_inputs), jnp.float32)

    w1, b1 = init_linear(k1, num_inputs, num_hidden)
    w2, b2 = init_linear(k2, num_hidden, num_hidden)
    w3, b3 = init_linear(k3, num_hidden, num_hidden)
    w4, b4 = init_linear(k4, num_outputs, num_outputs)
    params = (w1, b1, w2, b2, w3, b3, w4, b4)

    (spk_recs, mem4) = net_small_forward(x, params, beta=beta)
    jax.block_until_ready(mem4)
    for s in spk_recs:
        jax.block_until_ready(s)

    # Cross-check against a pure-JAX per-step reference of the same recurrence.
    (ref_recs, ref_mem4) = net_small_reference(x, params, beta=beta)
    for got, ref in zip(spk_recs, ref_recs):
        assert got.shape == ref.shape
        assert jnp.allclose(got, ref, atol=1e-5), "spike record mismatch"
    assert jnp.allclose(mem4, ref_mem4, atol=1e-4), "mem4 mismatch"

    print("KERNEL_OK")
</pallas_src>

<mosaic_0001>
module attributes {stable_mosaic.version = 11 : i64} {
  func.func @snn_kernel(%arg0: memref<64x16xbf16, #tpu.memory_space<vmem>>, %arg1: memref<16x32xbf16, #tpu.memory_space<vmem>>, %arg2: memref<1x32xf32, #tpu.memory_space<vmem>>, %arg3: memref<32x32xbf16, #tpu.memory_space<vmem>>, %arg4: memref<1x32xf32, #tpu.memory_space<vmem>>, %arg5: memref<32x32xbf16, #tpu.memory_space<vmem>>, %arg6: memref<1x32xf32, #tpu.memory_space<vmem>>, %arg7: memref<32x32xbf16, #tpu.memory_space<vmem>>, %arg8: memref<1x32xf32, #tpu.memory_space<vmem>>, %arg9: memref<64x128xbf16, #tpu.memory_space<vmem>>, %arg10: memref<8x32xf32, #tpu.memory_space<vmem>>) attributes {dimension_semantics = [], scalar_prefetch = 0 : i64, scratch_operands = 0 : i64, tpu.core_type = #tpu.core_type<tc>} {
    %c0 = arith.constant 0 : index
    %c0_0 = arith.constant 0 : index
    %0 = vector.load %arg0[%c0, %c0_0] : memref<64x16xbf16, #tpu.memory_space<vmem>>, vector<64x16xbf16>
    %c0_1 = arith.constant 0 : index
    %c0_2 = arith.constant 0 : index
    %1 = vector.load %arg1[%c0_1, %c0_2] : memref<16x32xbf16, #tpu.memory_space<vmem>>, vector<16x32xbf16>
    %c0_3 = arith.constant 0 : index
    %c0_4 = arith.constant 0 : index
    %2 = vector.load %arg2[%c0_3, %c0_4] : memref<1x32xf32, #tpu.memory_space<vmem>>, vector<1x32xf32>
    %cst = arith.constant dense<0.000000e+00> : vector<64x32xf32>
    %3 = tpu.matmul %0, %1, %cst {dimension_numbers = #tpu.dot_dimension_numbers<[1], [0], [0], [1], [0, 0, 1, 1], [], []>} : vector<64x16xbf16>, vector<16x32xbf16>, vector<64x32xf32> -> vector<64x32xf32>
    %4 = vector.broadcast %2 : vector<1x32xf32> to vector<64x32xf32>
    %5 = arith.addf %3, %4 : vector<64x32xf32>
    %cst_5 = arith.constant 0.000000e+00 : f32
    %6 = vector.broadcast %cst_5 : f32 to vector<8x32xf32>
    %7 = vector.extract_strided_slice %5 {offsets = [0, 0], sizes = [8, 32], strides = [1, 1]} : vector<64x32xf32> to vector<8x32xf32>
    %cst_6 = arith.constant 1.000000e+00 : f32
    %8 = vector.broadcast %cst_6 : f32 to vector<8x32xf32>
    %9 = arith.cmpf ogt, %6, %8 : vector<8x32xf32>
    %10 = arith.extui %9 : vector<8x32xi1> to vector<8x32xi32>
    %11 = arith.sitofp %10 : vector<8x32xi32> to vector<8x32xf32>
    %cst_7 = arith.constant 0.899999976 : f32
    %12 = vector.broadcast %cst_7 : f32 to vector<8x32xf32>
    %13 = arith.mulf %12, %6 : vector<8x32xf32>
    %14 = arith.addf %13, %7 : vector<8x32xf32>
    %cst_8 = arith.constant 1.000000e+00 : f32
    %15 = vector.broadcast %cst_8 : f32 to vector<8x32xf32>
    %16 = arith.mulf %11, %15 : vector<8x32xf32>
    %17 = arith.subf %14, %16 : vector<8x32xf32>
    %cst_9 = arith.constant 1.000000e+00 : f32
    %18 = vector.broadcast %cst_9 : f32 to vector<8x32xf32>
    %19 = arith.cmpf ogt, %17, %18 : vector<8x32xf32>
    %20 = arith.extui %19 : vector<8x32xi1> to vector<8x32xi32>
    %21 = arith.sitofp %20 : vector<8x32xi32> to vector<8x32xf32>
    %22 = arith.truncf %21 : vector<8x32xf32> to vector<8x32xbf16>
    %23 = vector.extract_strided_slice %5 {offsets = [8, 0], sizes = [8, 32], strides = [1, 1]} : vector<64x32xf32> to vector<8x32xf32>
    %cst_10 = arith.constant 1.000000e+00 : f32
    %24 = vector.broadcast %cst_10 : f32 to vector<8x32xf32>
    %25 = arith.cmpf ogt, %17, %24 : vector<8x32xf32>
    %26 = arith.extui %25 : vector<8x32xi1> to vector<8x32xi32>
    %27 = arith.sitofp %26 : vector<8x32xi32> to vector<8x32xf32>
    %cst_11 = arith.constant 0.899999976 : f32
    %28 = vector.broadcast %cst_11 : f32 to vector<8x32xf32>
    %29 = arith.mulf %28, %17 : vector<8x32xf32>
    %30 = arith.addf %29, %23 : vector<8x32xf32>
    %cst_12 = arith.constant 1.000000e+00 : f32
    %31 = vector.broadcast %cst_12 : f32 to vector<8x32xf32>
    %32 = arith.mulf %27, %31 : vector<8x32xf32>
    %33 = arith.subf %30, %32 : vector<8x32xf32>
    %cst_13 = arith.constant 1.000000e+00 : f32
    %34 = vector.broadcast %cst_13 : f32 to vector<8x32xf32>
    %35 = arith.cmpf ogt, %33, %34 : vector<8x32xf32>
    %36 = arith.extui %35 : vector<8x32xi1> to vector<8x32xi32>
    %37 = arith.sitofp %36 : vector<8x32xi32> to vector<8x32xf32>
    %38 = arith.truncf %37 : vector<8x32xf32> to vector<8x32xbf16>
    %39 = vector.extract_strided_slice %5 {offsets = [16, 0], sizes = [8, 32], strides = [1, 1]} : vector<64x32xf32> to vector<8x32xf32>
    %cst_14 = arith.constant 1.000000e+00 : f32
    %40 = vector.broadcast %cst_14 : f32 to vector<8x32xf32>
    %41 = arith.cmpf ogt, %33, %40 : vector<8x32xf32>
    %42 = arith.extui %41 : vector<8x32xi1> to vector<8x32xi32>
    %43 = arith.sitofp %42 : vector<8x32xi32> to vector<8x32xf32>
    %cst_15 = arith.constant 0.899999976 : f32
    %44 = vector.broadcast %cst_15 : f32 to vector<8x32xf32>
    %45 = arith.mulf %44, %33 : vector<8x32xf32>
    %46 = arith.addf %45, %39 : vector<8x32xf32>
    %cst_16 = arith.constant 1.000000e+00 : f32
    %47 = vector.broadcast %cst_16 : f32 to vector<8x32xf32>
    %48 = arith.mulf %43, %47 : vector<8x32xf32>
    %49 = arith.subf %46, %48 : vector<8x32xf32>
    %cst_17 = arith.constant 1.000000e+00 : f32
    %50 = vector.broadcast %cst_17 : f32 to vector<8x32xf32>
    %51 = arith.cmpf ogt, %49, %50 : vector<8x32xf32>
    %52 = arith.extui %51 : vector<8x32xi1> to vector<8x32xi32>
    %53 = arith.sitofp %52 : vector<8x32xi32> to vector<8x32xf32>
    %54 = arith.truncf %53 : vector<8x32xf32> to vector<8x32xbf16>
    %55 = vector.extract_strided_slice %5 {offsets = [24, 0], sizes = [8, 32], strides = [1, 1]} : vector<64x32xf32> to vector<8x32xf32>
    %cst_18 = arith.constant 1.000000e+00 : f32
    %56 = vector.broadcast %cst_18 : f32 to vector<8x32xf32>
    %57 = arith.cmpf ogt, %49, %56 : vector<8x32xf32>
    %58 = arith.extui %57 : vector<8x32xi1> to vector<8x32xi32>
    %59 = arith.sitofp %58 : vector<8x32xi32> to vector<8x32xf32>
    %cst_19 = arith.constant 0.899999976 : f32
    %60 = vector.broadcast %cst_19 : f32 to vector<8x32xf32>
    %61 = arith.mulf %60, %49 : vector<8x32xf32>
    %62 = arith.addf %61, %55 : vector<8x32xf32>
    %cst_20 = arith.constant 1.000000e+00 : f32
    %63 = vector.broadcast %cst_20 : f32 to vector<8x32xf32>
    %64 = arith.mulf %59, %63 : vector<8x32xf32>
    %65 = arith.subf %62, %64 : vector<8x32xf32>
    %cst_21 = arith.constant 1.000000e+00 : f32
    %66 = vector.broadcast %cst_21 : f32 to vector<8x32xf32>
    %67 = arith.cmpf ogt, %65, %66 : vector<8x32xf32>
    %68 = arith.extui %67 : vector<8x32xi1> to vector<8x32xi32>
    %69 = arith.sitofp %68 : vector<8x32xi32> to vector<8x32xf32>
    %70 = arith.truncf %69 : vector<8x32xf32> to vector<8x32xbf16>
    %71 = vector.extract_strided_slice %5 {offsets = [32, 0], sizes = [8, 32], strides = [1, 1]} : vector<64x32xf32> to vector<8x32xf32>
    %cst_22 = arith.constant 1.000000e+00 : f32
    %72 = vector.broadcast %cst_22 : f32 to vector<8x32xf32>
    %73 = arith.cmpf ogt, %65, %72 : vector<8x32xf32>
    %74 = arith.extui %73 : vector<8x32xi1> to vector<8x32xi32>
    %75 = arith.sitofp %74 : vector<8x32xi32> to vector<8x32xf32>
    %cst_23 = arith.constant 0.899999976 : f32
    %76 = vector.broadcast %cst_23 : f32 to vector<8x32xf32>
    %77 = arith.mulf %76, %65 : vector<8x32xf32>
    %78 = arith.addf %77, %71 : vector<8x32xf32>
    %cst_24 = arith.constant 1.000000e+00 : f32
    %79 = vector.broadcast %cst_24 : f32 to vector<8x32xf32>
    %80 = arith.mulf %75, %79 : vector<8x32xf32>
    %81 = arith.subf %78, %80 : vector<8x32xf32>
    %cst_25 = arith.constant 1.000000e+00 : f32
    %82 = vector.broadcast %cst_25 : f32 to vector<8x32xf32>
    %83 = arith.cmpf ogt, %81, %82 : vector<8x32xf32>
    %84 = arith.extui %83 : vector<8x32xi1> to vector<8x32xi32>
    %85 = arith.sitofp %84 : vector<8x32xi32> to vector<8x32xf32>
    %86 = arith.truncf %85 : vector<8x32xf32> to vector<8x32xbf16>
    %87 = vector.extract_strided_slice %5 {offsets = [40, 0], sizes = [8, 32], strides = [1, 1]} : vector<64x32xf32> to vector<8x32xf32>
    %cst_26 = arith.constant 1.000000e+00 : f32
    %88 = vector.broadcast %cst_26 : f32 to vector<8x32xf32>
    %89 = arith.cmpf ogt, %81, %88 : vector<8x32xf32>
    %90 = arith.extui %89 : vector<8x32xi1> to vector<8x32xi32>
    %91 = arith.sitofp %90 : vector<8x32xi32> to vector<8x32xf32>
    %cst_27 = arith.constant 0.899999976 : f32
    %92 = vector.broadcast %cst_27 : f32 to vector<8x32xf32>
    %93 = arith.mulf %92, %81 : vector<8x32xf32>
    %94 = arith.addf %93, %87 : vector<8x32xf32>
    %cst_28 = arith.constant 1.000000e+00 : f32
    %95 = vector.broadcast %cst_28 : f32 to vector<8x32xf32>
    %96 = arith.mulf %91, %95 : vector<8x32xf32>
    %97 = arith.subf %94, %96 : vector<8x32xf32>
    %cst_29 = arith.constant 1.000000e+00 : f32
    %98 = vector.broadcast %cst_29 : f32 to vector<8x32xf32>
    %99 = arith.cmpf ogt, %97, %98 : vector<8x32xf32>
    %100 = arith.extui %99 : vector<8x32xi1> to vector<8x32xi32>
    %101 = arith.sitofp %100 : vector<8x32xi32> to vector<8x32xf32>
    %102 = arith.truncf %101 : vector<8x32xf32> to vector<8x32xbf16>
    %103 = vector.extract_strided_slice %5 {offsets = [48, 0], sizes = [8, 32], strides = [1, 1]} : vector<64x32xf32> to vector<8x32xf32>
    %cst_30 = arith.constant 1.000000e+00 : f32
    %104 = vector.broadcast %cst_30 : f32 to vector<8x32xf32>
    %105 = arith.cmpf ogt, %97, %104 : vector<8x32xf32>
    %106 = arith.extui %105 : vector<8x32xi1> to vector<8x32xi32>
    %107 = arith.sitofp %106 : vector<8x32xi32> to vector<8x32xf32>
    %cst_31 = arith.constant 0.899999976 : f32
    %108 = vector.broadcast %cst_31 : f32 to vector<8x32xf32>
    %109 = arith.mulf %108, %97 : vector<8x32xf32>
    %110 = arith.addf %109, %103 : vector<8x32xf32>
    %cst_32 = arith.constant 1.000000e+00 : f32
    %111 = vector.broadcast %cst_32 : f32 to vector<8x32xf32>
    %112 = arith.mulf %107, %111 : vector<8x32xf32>
    %113 = arith.subf %110, %112 : vector<8x32xf32>
    %cst_33 = arith.constant 1.000000e+00 : f32
    %114 = vector.broadcast %cst_33 : f32 to vector<8x32xf32>
    %115 = arith.cmpf ogt, %113, %114 : vector<8x32xf32>
    %116 = arith.extui %115 : vector<8x32xi1> to vector<8x32xi32>
    %117 = arith.sitofp %116 : vector<8x32xi32> to vector<8x32xf32>
    %118 = arith.truncf %117 : vector<8x32xf32> to vector<8x32xbf16>
    %119 = vector.extract_strided_slice %5 {offsets = [56, 0], sizes = [8, 32], strides = [1, 1]} : vector<64x32xf32> to vector<8x32xf32>
    %cst_34 = arith.constant 1.000000e+00 : f32
    %120 = vector.broadcast %cst_34 : f32 to vector<8x32xf32>
    %121 = arith.cmpf ogt, %113, %120 : vector<8x32xf32>
    %122 = arith.extui %121 : vector<8x32xi1> to vector<8x32xi32>
    %123 = arith.sitofp %122 : vector<8x32xi32> to vector<8x32xf32>
    %cst_35 = arith.constant 0.899999976 : f32
    %124 = vector.broadcast %cst_35 : f32 to vector<8x32xf32>
    %125 = arith.mulf %124, %113 : vector<8x32xf32>
    %126 = arith.addf %125, %119 : vector<8x32xf32>
    %cst_36 = arith.constant 1.000000e+00 : f32
    %127 = vector.broadcast %cst_36 : f32 to vector<8x32xf32>
    %128 = arith.mulf %123, %127 : vector<8x32xf32>
    %129 = arith.subf %126, %128 : vector<8x32xf32>
    %cst_37 = arith.constant 1.000000e+00 : f32
    %130 = vector.broadcast %cst_37 : f32 to vector<8x32xf32>
    %131 = arith.cmpf ogt, %129, %130 : vector<8x32xf32>
    %132 = arith.extui %131 : vector<8x32xi1> to vector<8x32xi32>
    %133 = arith.sitofp %132 : vector<8x32xi32> to vector<8x32xf32>
    %134 = arith.truncf %133 : vector<8x32xf32> to vector<8x32xbf16>
    %135 = tpu.concatenate %22, %38, %54, %70, %86, %102, %118, %134 in 0 : vector<8x32xbf16>, vector<8x32xbf16>, vector<8x32xbf16>, vector<8x32xbf16>, vector<8x32xbf16>, vector<8x32xbf16>, vector<8x32xbf16>, vector<8x32xbf16> -> vector<64x32xbf16>
    %c0_38 = arith.constant 0 : index
    %c0_39 = arith.constant 0 : index
    %136 = vector.load %arg3[%c0_38, %c0_39] : memref<32x32xbf16, #tpu.memory_space<vmem>>, vector<32x32xbf16>
    %c0_40 = arith.constant 0 : index
    %c0_41 = arith.constant 0 : index
    %137 = vector.load %arg4[%c0_40, %c0_41] : memref<1x32xf32, #tpu.memory_space<vmem>>, vector<1x32xf32>
    %cst_42 = arith.constant dense<0.000000e+00> : vector<64x32xf32>
    %138 = tpu.matmul %135, %136, %cst_42 {dimension_numbers = #tpu.dot_dimension_numbers<[1], [0], [0], [1], [0, 0, 1, 1], [], []>} : vector<64x32xbf16>, vector<32x32xbf16>, vector<64x32xf32> -> vector<64x32xf32>
    %139 = vector.broadcast %137 : vector<1x32xf32> to vector<64x32xf32>
    %140 = arith.addf %138, %139 : vector<64x32xf32>
    %cst_43 = arith.constant 0.000000e+00 : f32
    %141 = vector.broadcast %cst_43 : f32 to vector<8x32xf32>
    %142 = vector.extract_strided_slice %140 {offsets = [0, 0], sizes = [8, 32], strides = [1, 1]} : vector<64x32xf32> to vector<8x32xf32>
    %cst_44 = arith.constant 1.000000e+00 : f32
    %143 = vector.broadcast %cst_44 : f32 to vector<8x32xf32>
    %144 = arith.cmpf ogt, %141, %143 : vector<8x32xf32>
    %145 = arith.extui %144 : vector<8x32xi1> to vector<8x32xi32>
    %146 = arith.sitofp %145 : vector<8x32xi32> to vector<8x32xf32>
    %cst_45 = arith.constant 0.899999976 : f32
    %147 = vector.broadcast %cst_45 : f32 to vector<8x32xf32>
    %148 = arith.mulf %147, %141 : vector<8x32xf32>
    %149 = arith.addf %148, %142 : vector<8x32xf32>
    %cst_46 = arith.constant 1.000000e+00 : f32
    %150 = vector.broadcast %cst_46 : f32 to vector<8x32xf32>
    %151 = arith.mulf %146, %150 : vector<8x32xf32>
    %152 = arith.subf %149, %151 : vector<8x32xf32>
    %cst_47 = arith.constant 1.000000e+00 : f32
    %153 = vector.broadcast %cst_47 : f32 to vector<8x32xf32>
    %154 = arith.cmpf ogt, %152, %153 : vector<8x32xf32>
    %155 = arith.extui %154 : vector<8x32xi1> to vector<8x32xi32>
    %156 = arith.sitofp %155 : vector<8x32xi32> to vector<8x32xf32>
    %157 = arith.truncf %156 : vector<8x32xf32> to vector<8x32xbf16>
    %158 = vector.extract_strided_slice %140 {offsets = [8, 0], sizes = [8, 32], strides = [1, 1]} : vector<64x32xf32> to vector<8x32xf32>
    %cst_48 = arith.constant 1.000000e+00 : f32
    %159 = vector.broadcast %cst_48 : f32 to vector<8x32xf32>
    %160 = arith.cmpf ogt, %152, %159 : vector<8x32xf32>
    %161 = arith.extui %160 : vector<8x32xi1> to vector<8x32xi32>
    %162 = arith.sitofp %161 : vector<8x32xi32> to vector<8x32xf32>
    %cst_49 = arith.constant 0.899999976 : f32
    %163 = vector.broadcast %cst_49 : f32 to vector<8x32xf32>
    %164 = arith.mulf %163, %152 : vector<8x32xf32>
    %165 = arith.addf %164, %158 : vector<8x32xf32>
    %cst_50 = arith.constant 1.000000e+00 : f32
    %166 = vector.broadcast %cst_50 : f32 to vector<8x32xf32>
    %167 = arith.mulf %162, %166 : vector<8x32xf32>
    %168 = arith.subf %165, %167 : vector<8x32xf32>
    %cst_51 = arith.constant 1.000000e+00 : f32
    %169 = vector.broadcast %cst_51 : f32 to vector<8x32xf32>
    %170 = arith.cmpf ogt, %168, %169 : vector<8x32xf32>
    %171 = arith.extui %170 : vector<8x32xi1> to vector<8x32xi32>
    %172 = arith.sitofp %171 : vector<8x32xi32> to vector<8x32xf32>
    %173 = arith.truncf %172 : vector<8x32xf32> to vector<8x32xbf16>
    %174 = vector.extract_strided_slice %140 {offsets = [16, 0], sizes = [8, 32], strides = [1, 1]} : vector<64x32xf32> to vector<8x32xf32>
    %cst_52 = arith.constant 1.000000e+00 : f32
    %175 = vector.broadcast %cst_52 : f32 to vector<8x32xf32>
    %176 = arith.cmpf ogt, %168, %175 : vector<8x32xf32>
    %177 = arith.extui %176 : vector<8x32xi1> to vector<8x32xi32>
    %178 = arith.sitofp %177 : vector<8x32xi32> to vector<8x32xf32>
    %cst_53 = arith.constant 0.899999976 : f32
    %179 = vector.broadcast %cst_53 : f32 to vector<8x32xf32>
    %180 = arith.mulf %179, %168 : vector<8x32xf32>
    %181 = arith.addf %180, %174 : vector<8x32xf32>
    %cst_54 = arith.constant 1.000000e+00 : f32
    %182 = vector.broadcast %cst_54 : f32 to vector<8x32xf32>
    %183 = arith.mulf %178, %182 : vector<8x32xf32>
    %184 = arith.subf %181, %183 : vector<8x32xf32>
    %cst_55 = arith.constant 1.000000e+00 : f32
    %185 = vector.broadcast %cst_55 : f32 to vector<8x32xf32>
    %186 = arith.cmpf ogt, %184, %185 : vector<8x32xf32>
    %187 = arith.extui %186 : vector<8x32xi1> to vector<8x32xi32>
    %188 = arith.sitofp %187 : vector<8x32xi32> to vector<8x32xf32>
    %189 = arith.truncf %188 : vector<8x32xf32> to vector<8x32xbf16>
    %190 = vector.extract_strided_slice %140 {offsets = [24, 0], sizes = [8, 32], strides = [1, 1]} : vector<64x32xf32> to vector<8x32xf32>
    %cst_56 = arith.constant 1.000000e+00 : f32
    %191 = vector.broadcast %cst_56 : f32 to vector<8x32xf32>
    %192 = arith.cmpf ogt, %184, %191 : vector<8x32xf32>
    %193 = arith.extui %192 : vector<8x32xi1> to vector<8x32xi32>
    %194 = arith.sitofp %193 : vector<8x32xi32> to vector<8x32xf32>
    %cst_57 = arith.constant 0.899999976 : f32
    %195 = vector.broadcast %cst_57 : f32 to vector<8x32xf32>
    %196 = arith.mulf %195, %184 : vector<8x32xf32>
    %197 = arith.addf %196, %190 : vector<8x32xf32>
    %cst_58 = arith.constant 1.000000e+00 : f32
    %198 = vector.broadcast %cst_58 : f32 to vector<8x32xf32>
    %199 = arith.mulf %194, %198 : vector<8x32xf32>
    %200 = arith.subf %197, %199 : vector<8x32xf32>
    %cst_59 = arith.constant 1.000000e+00 : f32
    %201 = vector.broadcast %cst_59 : f32 to vector<8x32xf32>
    %202 = arith.cmpf ogt, %200, %201 : vector<8x32xf32>
    %203 = arith.extui %202 : vector<8x32xi1> to vector<8x32xi32>
    %204 = arith.sitofp %203 : vector<8x32xi32> to vector<8x32xf32>
    %205 = arith.truncf %204 : vector<8x32xf32> to vector<8x32xbf16>
    %206 = vector.extract_strided_slice %140 {offsets = [32, 0], sizes = [8, 32], strides = [1, 1]} : vector<64x32xf32> to vector<8x32xf32>
    %cst_60 = arith.constant 1.000000e+00 : f32
    %207 = vector.broadcast %cst_60 : f32 to vector<8x32xf32>
    %208 = arith.cmpf ogt, %200, %207 : vector<8x32xf32>
    %209 = arith.extui %208 : vector<8x32xi1> to vector<8x32xi32>
    %210 = arith.sitofp %209 : vector<8x32xi32> to vector<8x32xf32>
    %cst_61 = arith.constant 0.899999976 : f32
    %211 = vector.broadcast %cst_61 : f32 to vector<8x32xf32>
    %212 = arith.mulf %211, %200 : vector<8x32xf32>
    %213 = arith.addf %212, %206 : vector<8x32xf32>
    %cst_62 = arith.constant 1.000000e+00 : f32
    %214 = vector.broadcast %cst_62 : f32 to vector<8x32xf32>
    %215 = arith.mulf %210, %214 : vector<8x32xf32>
    %216 = arith.subf %213, %215 : vector<8x32xf32>
    %cst_63 = arith.constant 1.000000e+00 : f32
    %217 = vector.broadcast %cst_63 : f32 to vector<8x32xf32>
    %218 = arith.cmpf ogt, %216, %217 : vector<8x32xf32>
    %219 = arith.extui %218 : vector<8x32xi1> to vector<8x32xi32>
    %220 = arith.sitofp %219 : vector<8x32xi32> to vector<8x32xf32>
    %221 = arith.truncf %220 : vector<8x32xf32> to vector<8x32xbf16>
    %222 = vector.extract_strided_slice %140 {offsets = [40, 0], sizes = [8, 32], strides = [1, 1]} : vector<64x32xf32> to vector<8x32xf32>
    %cst_64 = arith.constant 1.000000e+00 : f32
    %223 = vector.broadcast %cst_64 : f32 to vector<8x32xf32>
    %224 = arith.cmpf ogt, %216, %223 : vector<8x32xf32>
    %225 = arith.extui %224 : vector<8x32xi1> to vector<8x32xi32>
    %226 = arith.sitofp %225 : vector<8x32xi32> to vector<8x32xf32>
    %cst_65 = arith.constant 0.899999976 : f32
    %227 = vector.broadcast %cst_65 : f32 to vector<8x32xf32>
    %228 = arith.mulf %227, %216 : vector<8x32xf32>
    %229 = arith.addf %228, %222 : vector<8x32xf32>
    %cst_66 = arith.constant 1.000000e+00 : f32
    %230 = vector.broadcast %cst_66 : f32 to vector<8x32xf32>
    %231 = arith.mulf %226, %230 : vector<8x32xf32>
    %232 = arith.subf %229, %231 : vector<8x32xf32>
    %cst_67 = arith.constant 1.000000e+00 : f32
    %233 = vector.broadcast %cst_67 : f32 to vector<8x32xf32>
    %234 = arith.cmpf ogt, %232, %233 : vector<8x32xf32>
    %235 = arith.extui %234 : vector<8x32xi1> to vector<8x32xi32>
    %236 = arith.sitofp %235 : vector<8x32xi32> to vector<8x32xf32>
    %237 = arith.truncf %236 : vector<8x32xf32> to vector<8x32xbf16>
    %238 = vector.extract_strided_slice %140 {offsets = [48, 0], sizes = [8, 32], strides = [1, 1]} : vector<64x32xf32> to vector<8x32xf32>
    %cst_68 = arith.constant 1.000000e+00 : f32
    %239 = vector.broadcast %cst_68 : f32 to vector<8x32xf32>
    %240 = arith.cmpf ogt, %232, %239 : vector<8x32xf32>
    %241 = arith.extui %240 : vector<8x32xi1> to vector<8x32xi32>
    %242 = arith.sitofp %241 : vector<8x32xi32> to vector<8x32xf32>
    %cst_69 = arith.constant 0.899999976 : f32
    %243 = vector.broadcast %cst_69 : f32 to vector<8x32xf32>
    %244 = arith.mulf %243, %232 : vector<8x32xf32>
    %245 = arith.addf %244, %238 : vector<8x32xf32>
    %cst_70 = arith.constant 1.000000e+00 : f32
    %246 = vector.broadcast %cst_70 : f32 to vector<8x32xf32>
    %247 = arith.mulf %242, %246 : vector<8x32xf32>
    %248 = arith.subf %245, %247 : vector<8x32xf32>
    %cst_71 = arith.constant 1.000000e+00 : f32
    %249 = vector.broadcast %cst_71 : f32 to vector<8x32xf32>
    %250 = arith.cmpf ogt, %248, %249 : vector<8x32xf32>
    %251 = arith.extui %250 : vector<8x32xi1> to vector<8x32xi32>
    %252 = arith.sitofp %251 : vector<8x32xi32> to vector<8x32xf32>
    %253 = arith.truncf %252 : vector<8x32xf32> to vector<8x32xbf16>
    %254 = vector.extract_strided_slice %140 {offsets = [56, 0], sizes = [8, 32], strides = [1, 1]} : vector<64x32xf32> to vector<8x32xf32>
    %cst_72 = arith.constant 1.000000e+00 : f32
    %255 = vector.broadcast %cst_72 : f32 to vector<8x32xf32>
    %256 = arith.cmpf ogt, %248, %255 : vector<8x32xf32>
    %257 = arith.extui %256 : vector<8x32xi1> to vector<8x32xi32>
    %258 = arith.sitofp %257 : vector<8x32xi32> to vector<8x32xf32>
    %cst_73 = arith.constant 0.899999976 : f32
    %259 = vector.broadcast %cst_73 : f32 to vector<8x32xf32>
    %260 = arith.mulf %259, %248 : vector<8x32xf32>
    %261 = arith.addf %260, %254 : vector<8x32xf32>
    %cst_74 = arith.constant 1.000000e+00 : f32
    %262 = vector.broadcast %cst_74 : f32 to vector<8x32xf32>
    %263 = arith.mulf %258, %262 : vector<8x32xf32>
    %264 = arith.subf %261, %263 : vector<8x32xf32>
    %cst_75 = arith.constant 1.000000e+00 : f32
    %265 = vector.broadcast %cst_75 : f32 to vector<8x32xf32>
    %266 = arith.cmpf ogt, %264, %265 : vector<8x32xf32>
    %267 = arith.extui %266 : vector<8x32xi1> to vector<8x32xi32>
    %268 = arith.sitofp %267 : vector<8x32xi32> to vector<8x32xf32>
    %269 = arith.truncf %268 : vector<8x32xf32> to vector<8x32xbf16>
    %270 = tpu.concatenate %157, %173, %189, %205, %221, %237, %253, %269 in 0 : vector<8x32xbf16>, vector<8x32xbf16>, vector<8x32xbf16>, vector<8x32xbf16>, vector<8x32xbf16>, vector<8x32xbf16>, vector<8x32xbf16>, vector<8x32xbf16> -> vector<64x32xbf16>
    %c0_76 = arith.constant 0 : index
    %c0_77 = arith.constant 0 : index
    %271 = vector.load %arg5[%c0_76, %c0_77] : memref<32x32xbf16, #tpu.memory_space<vmem>>, vector<32x32xbf16>
    %c0_78 = arith.constant 0 : index
    %c0_79 = arith.constant 0 : index
    %272 = vector.load %arg6[%c0_78, %c0_79] : memref<1x32xf32, #tpu.memory_space<vmem>>, vector<1x32xf32>
    %cst_80 = arith.constant dense<0.000000e+00> : vector<64x32xf32>
    %273 = tpu.matmul %270, %271, %cst_80 {dimension_numbers = #tpu.dot_dimension_numbers<[1], [0], [0], [1], [0, 0, 1, 1], [], []>} : vector<64x32xbf16>, vector<32x32xbf16>, vector<64x32xf32> -> vector<64x32xf32>
    %274 = vector.broadcast %272 : vector<1x32xf32> to vector<64x32xf32>
    %275 = arith.addf %273, %274 : vector<64x32xf32>
    %cst_81 = arith.constant 0.000000e+00 : f32
    %276 = vector.broadcast %cst_81 : f32 to vector<8x32xf32>
    %277 = vector.extract_strided_slice %275 {offsets = [0, 0], sizes = [8, 32], strides = [1, 1]} : vector<64x32xf32> to vector<8x32xf32>
    %cst_82 = arith.constant 1.000000e+00 : f32
    %278 = vector.broadcast %cst_82 : f32 to vector<8x32xf32>
    %279 = arith.cmpf ogt, %276, %278 : vector<8x32xf32>
    %280 = arith.extui %279 : vector<8x32xi1> to vector<8x32xi32>
    %281 = arith.sitofp %280 : vector<8x32xi32> to vector<8x32xf32>
    %cst_83 = arith.constant 0.899999976 : f32
    %282 = vector.broadcast %cst_83 : f32 to vector<8x32xf32>
    %283 = arith.mulf %282, %276 : vector<8x32xf32>
    %284 = arith.addf %283, %277 : vector<8x32xf32>
    %cst_84 = arith.constant 1.000000e+00 : f32
    %285 = vector.broadcast %cst_84 : f32 to vector<8x32xf32>
    %286 = arith.mulf %281, %285 : vector<8x32xf32>
    %287 = arith.subf %284, %286 : vector<8x32xf32>
    %cst_85 = arith.constant 1.000000e+00 : f32
    %288 = vector.broadcast %cst_85 : f32 to vector<8x32xf32>
    %289 = arith.cmpf ogt, %287, %288 : vector<8x32xf32>
    %290 = arith.extui %289 : vector<8x32xi1> to vector<8x32xi32>
    %291 = arith.sitofp %290 : vector<8x32xi32> to vector<8x32xf32>
    %292 = arith.truncf %291 : vector<8x32xf32> to vector<8x32xbf16>
    %293 = vector.extract_strided_slice %275 {offsets = [8, 0], sizes = [8, 32], strides = [1, 1]} : vector<64x32xf32> to vector<8x32xf32>
    %cst_86 = arith.constant 1.000000e+00 : f32
    %294 = vector.broadcast %cst_86 : f32 to vector<8x32xf32>
    %295 = arith.cmpf ogt, %287, %294 : vector<8x32xf32>
    %296 = arith.extui %295 : vector<8x32xi1> to vector<8x32xi32>
    %297 = arith.sitofp %296 : vector<8x32xi32> to vector<8x32xf32>
    %cst_87 = arith.constant 0.899999976 : f32
    %298 = vector.broadcast %cst_87 : f32 to vector<8x32xf32>
    %299 = arith.mulf %298, %287 : vector<8x32xf32>
    %300 = arith.addf %299, %293 : vector<8x32xf32>
    %cst_88 = arith.constant 1.000000e+00 : f32
    %301 = vector.broadcast %cst_88 : f32 to vector<8x32xf32>
    %302 = arith.mulf %297, %301 : vector<8x32xf32>
    %303 = arith.subf %300, %302 : vector<8x32xf32>
    %cst_89 = arith.constant 1.000000e+00 : f32
    %304 = vector.broadcast %cst_89 : f32 to vector<8x32xf32>
    %305 = arith.cmpf ogt, %303, %304 : vector<8x32xf32>
    %306 = arith.extui %305 : vector<8x32xi1> to vector<8x32xi32>
    %307 = arith.sitofp %306 : vector<8x32xi32> to vector<8x32xf32>
    %308 = arith.truncf %307 : vector<8x32xf32> to vector<8x32xbf16>
    %309 = vector.extract_strided_slice %275 {offsets = [16, 0], sizes = [8, 32], strides = [1, 1]} : vector<64x32xf32> to vector<8x32xf32>
    %cst_90 = arith.constant 1.000000e+00 : f32
    %310 = vector.broadcast %cst_90 : f32 to vector<8x32xf32>
    %311 = arith.cmpf ogt, %303, %310 : vector<8x32xf32>
    %312 = arith.extui %311 : vector<8x32xi1> to vector<8x32xi32>
    %313 = arith.sitofp %312 : vector<8x32xi32> to vector<8x32xf32>
    %cst_91 = arith.constant 0.899999976 : f32
    %314 = vector.broadcast %cst_91 : f32 to vector<8x32xf32>
    %315 = arith.mulf %314, %303 : vector<8x32xf32>
    %316 = arith.addf %315, %309 : vector<8x32xf32>
    %cst_92 = arith.constant 1.000000e+00 : f32
    %317 = vector.broadcast %cst_92 : f32 to vector<8x32xf32>
    %318 = arith.mulf %313, %317 : vector<8x32xf32>
    %319 = arith.subf %316, %318 : vector<8x32xf32>
    %cst_93 = arith.constant 1.000000e+00 : f32
    %320 = vector.broadcast %cst_93 : f32 to vector<8x32xf32>
    %321 = arith.cmpf ogt, %319, %320 : vector<8x32xf32>
    %322 = arith.extui %321 : vector<8x32xi1> to vector<8x32xi32>
    %323 = arith.sitofp %322 : vector<8x32xi32> to vector<8x32xf32>
    %324 = arith.truncf %323 : vector<8x32xf32> to vector<8x32xbf16>
    %325 = vector.extract_strided_slice %275 {offsets = [24, 0], sizes = [8, 32], strides = [1, 1]} : vector<64x32xf32> to vector<8x32xf32>
    %cst_94 = arith.constant 1.000000e+00 : f32
    %326 = vector.broadcast %cst_94 : f32 to vector<8x32xf32>
    %327 = arith.cmpf ogt, %319, %326 : vector<8x32xf32>
    %328 = arith.extui %327 : vector<8x32xi1> to vector<8x32xi32>
    %329 = arith.sitofp %328 : vector<8x32xi32> to vector<8x32xf32>
    %cst_95 = arith.constant 0.899999976 : f32
    %330 = vector.broadcast %cst_95 : f32 to vector<8x32xf32>
    %331 = arith.mulf %330, %319 : vector<8x32xf32>
    %332 = arith.addf %331, %325 : vector<8x32xf32>
    %cst_96 = arith.constant 1.000000e+00 : f32
    %333 = vector.broadcast %cst_96 : f32 to vector<8x32xf32>
    %334 = arith.mulf %329, %333 : vector<8x32xf32>
    %335 = arith.subf %332, %334 : vector<8x32xf32>
    %cst_97 = arith.constant 1.000000e+00 : f32
    %336 = vector.broadcast %cst_97 : f32 to vector<8x32xf32>
    %337 = arith.cmpf ogt, %335, %336 : vector<8x32xf32>
    %338 = arith.extui %337 : vector<8x32xi1> to vector<8x32xi32>
    %339 = arith.sitofp %338 : vector<8x32xi32> to vector<8x32xf32>
    %340 = arith.truncf %339 : vector<8x32xf32> to vector<8x32xbf16>
    %341 = vector.extract_strided_slice %275 {offsets = [32, 0], sizes = [8, 32], strides = [1, 1]} : vector<64x32xf32> to vector<8x32xf32>
    %cst_98 = arith.constant 1.000000e+00 : f32
    %342 = vector.broadcast %cst_98 : f32 to vector<8x32xf32>
    %343 = arith.cmpf ogt, %335, %342 : vector<8x32xf32>
    %344 = arith.extui %343 : vector<8x32xi1> to vector<8x32xi32>
    %345 = arith.sitofp %344 : vector<8x32xi32> to vector<8x32xf32>
    %cst_99 = arith.constant 0.899999976 : f32
    %346 = vector.broadcast %cst_99 : f32 to vector<8x32xf32>
    %347 = arith.mulf %346, %335 : vector<8x32xf32>
    %348 = arith.addf %347, %341 : vector<8x32xf32>
    %cst_100 = arith.constant 1.000000e+00 : f32
    %349 = vector.broadcast %cst_100 : f32 to vector<8x32xf32>
    %350 = arith.mulf %345, %349 : vector<8x32xf32>
    %351 = arith.subf %348, %350 : vector<8x32xf32>
    %cst_101 = arith.constant 1.000000e+00 : f32
    %352 = vector.broadcast %cst_101 : f32 to vector<8x32xf32>
    %353 = arith.cmpf ogt, %351, %352 : vector<8x32xf32>
    %354 = arith.extui %353 : vector<8x32xi1> to vector<8x32xi32>
    %355 = arith.sitofp %354 : vector<8x32xi32> to vector<8x32xf32>
    %356 = arith.truncf %355 : vector<8x32xf32> to vector<8x32xbf16>
    %357 = vector.extract_strided_slice %275 {offsets = [40, 0], sizes = [8, 32], strides = [1, 1]} : vector<64x32xf32> to vector<8x32xf32>
    %cst_102 = arith.constant 1.000000e+00 : f32
    %358 = vector.broadcast %cst_102 : f32 to vector<8x32xf32>
    %359 = arith.cmpf ogt, %351, %358 : vector<8x32xf32>
    %360 = arith.extui %359 : vector<8x32xi1> to vector<8x32xi32>
    %361 = arith.sitofp %360 : vector<8x32xi32> to vector<8x32xf32>
    %cst_103 = arith.constant 0.899999976 : f32
    %362 = vector.broadcast %cst_103 : f32 to vector<8x32xf32>
    %363 = arith.mulf %362, %351 : vector<8x32xf32>
    %364 = arith.addf %363, %357 : vector<8x32xf32>
    %cst_104 = arith.constant 1.000000e+00 : f32
    %365 = vector.broadcast %cst_104 : f32 to vector<8x32xf32>
    %366 = arith.mulf %361, %365 : vector<8x32xf32>
    %367 = arith.subf %364, %366 : vector<8x32xf32>
    %cst_105 = arith.constant 1.000000e+00 : f32
    %368 = vector.broadcast %cst_105 : f32 to vector<8x32xf32>
    %369 = arith.cmpf ogt, %367, %368 : vector<8x32xf32>
    %370 = arith.extui %369 : vector<8x32xi1> to vector<8x32xi32>
    %371 = arith.sitofp %370 : vector<8x32xi32> to vector<8x32xf32>
    %372 = arith.truncf %371 : vector<8x32xf32> to vector<8x32xbf16>
    %373 = vector.extract_strided_slice %275 {offsets = [48, 0], sizes = [8, 32], strides = [1, 1]} : vector<64x32xf32> to vector<8x32xf32>
    %cst_106 = arith.constant 1.000000e+00 : f32
    %374 = vector.broadcast %cst_106 : f32 to vector<8x32xf32>
    %375 = arith.cmpf ogt, %367, %374 : vector<8x32xf32>
    %376 = arith.extui %375 : vector<8x32xi1> to vector<8x32xi32>
    %377 = arith.sitofp %376 : vector<8x32xi32> to vector<8x32xf32>
    %cst_107 = arith.constant 0.899999976 : f32
    %378 = vector.broadcast %cst_107 : f32 to vector<8x32xf32>
    %379 = arith.mulf %378, %367 : vector<8x32xf32>
    %380 = arith.addf %379, %373 : vector<8x32xf32>
    %cst_108 = arith.constant 1.000000e+00 : f32
    %381 = vector.broadcast %cst_108 : f32 to vector<8x32xf32>
    %382 = arith.mulf %377, %381 : vector<8x32xf32>
    %383 = arith.subf %380, %382 : vector<8x32xf32>
    %cst_109 = arith.constant 1.000000e+00 : f32
    %384 = vector.broadcast %cst_109 : f32 to vector<8x32xf32>
    %385 = arith.cmpf ogt, %383, %384 : vector<8x32xf32>
    %386 = arith.extui %385 : vector<8x32xi1> to vector<8x32xi32>
    %387 = arith.sitofp %386 : vector<8x32xi32> to vector<8x32xf32>
    %388 = arith.truncf %387 : vector<8x32xf32> to vector<8x32xbf16>
    %389 = vector.extract_strided_slice %275 {offsets = [56, 0], sizes = [8, 32], strides = [1, 1]} : vector<64x32xf32> to vector<8x32xf32>
    %cst_110 = arith.constant 1.000000e+00 : f32
    %390 = vector.broadcast %cst_110 : f32 to vector<8x32xf32>
    %391 = arith.cmpf ogt, %383, %390 : vector<8x32xf32>
    %392 = arith.extui %391 : vector<8x32xi1> to vector<8x32xi32>
    %393 = arith.sitofp %392 : vector<8x32xi32> to vector<8x32xf32>
    %cst_111 = arith.constant 0.899999976 : f32
    %394 = vector.broadcast %cst_111 : f32 to vector<8x32xf32>
    %395 = arith.mulf %394, %383 : vector<8x32xf32>
    %396 = arith.addf %395, %389 : vector<8x32xf32>
    %cst_112 = arith.constant 1.000000e+00 : f32
    %397 = vector.broadcast %cst_112 : f32 to vector<8x32xf32>
    %398 = arith.mulf %393, %397 : vector<8x32xf32>
    %399 = arith.subf %396, %398 : vector<8x32xf32>
    %cst_113 = arith.constant 1.000000e+00 : f32
    %400 = vector.broadcast %cst_113 : f32 to vector<8x32xf32>
    %401 = arith.cmpf ogt, %399, %400 : vector<8x32xf32>
    %402 = arith.extui %401 : vector<8x32xi1> to vector<8x32xi32>
    %403 = arith.sitofp %402 : vector<8x32xi32> to vector<8x32xf32>
    %404 = arith.truncf %403 : vector<8x32xf32> to vector<8x32xbf16>
    %405 = tpu.concatenate %292, %308, %324, %340, %356, %372, %388, %404 in 0 : vector<8x32xbf16>, vector<8x32xbf16>, vector<8x32xbf16>, vector<8x32xbf16>, vector<8x32xbf16>, vector<8x32xbf16>, vector<8x32xbf16>, vector<8x32xbf16> -> vector<64x32xbf16>
    %c0_114 = arith.constant 0 : index
    %c0_115 = arith.constant 0 : index
    %406 = vector.load %arg7[%c0_114, %c0_115] : memref<32x32xbf16, #tpu.memory_space<vmem>>, vector<32x32xbf16>
    %c0_116 = arith.constant 0 : index
    %c0_117 = arith.constant 0 : index
    %407 = vector.load %arg8[%c0_116, %c0_117] : memref<1x32xf32, #tpu.memory_space<vmem>>, vector<1x32xf32>
    %cst_118 = arith.constant dense<0.000000e+00> : vector<64x32xf32>
    %408 = tpu.matmul %405, %406, %cst_118 {dimension_numbers = #tpu.dot_dimension_numbers<[1], [0], [0], [1], [0, 0, 1, 1], [], []>} : vector<64x32xbf16>, vector<32x32xbf16>, vector<64x32xf32> -> vector<64x32xf32>
    %409 = vector.broadcast %407 : vector<1x32xf32> to vector<64x32xf32>
    %410 = arith.addf %408, %409 : vector<64x32xf32>
    %cst_119 = arith.constant 0.000000e+00 : f32
    %411 = vector.broadcast %cst_119 : f32 to vector<8x32xf32>
    %412 = vector.extract_strided_slice %410 {offsets = [0, 0], sizes = [8, 32], strides = [1, 1]} : vector<64x32xf32> to vector<8x32xf32>
    %cst_120 = arith.constant 1.000000e+00 : f32
    %413 = vector.broadcast %cst_120 : f32 to vector<8x32xf32>
    %414 = arith.cmpf ogt, %411, %413 : vector<8x32xf32>
    %415 = arith.extui %414 : vector<8x32xi1> to vector<8x32xi32>
    %416 = arith.sitofp %415 : vector<8x32xi32> to vector<8x32xf32>
    %cst_121 = arith.constant 0.899999976 : f32
    %417 = vector.broadcast %cst_121 : f32 to vector<8x32xf32>
    %418 = arith.mulf %417, %411 : vector<8x32xf32>
    %419 = arith.addf %418, %412 : vector<8x32xf32>
    %cst_122 = arith.constant 1.000000e+00 : f32
    %420 = vector.broadcast %cst_122 : f32 to vector<8x32xf32>
    %421 = arith.mulf %416, %420 : vector<8x32xf32>
    %422 = arith.subf %419, %421 : vector<8x32xf32>
    %cst_123 = arith.constant 1.000000e+00 : f32
    %423 = vector.broadcast %cst_123 : f32 to vector<8x32xf32>
    %424 = arith.cmpf ogt, %422, %423 : vector<8x32xf32>
    %425 = arith.extui %424 : vector<8x32xi1> to vector<8x32xi32>
    %426 = arith.sitofp %425 : vector<8x32xi32> to vector<8x32xf32>
    %427 = arith.truncf %426 : vector<8x32xf32> to vector<8x32xbf16>
    %428 = vector.extract_strided_slice %410 {offsets = [8, 0], sizes = [8, 32], strides = [1, 1]} : vector<64x32xf32> to vector<8x32xf32>
    %cst_124 = arith.constant 1.000000e+00 : f32
    %429 = vector.broadcast %cst_124 : f32 to vector<8x32xf32>
    %430 = arith.cmpf ogt, %422, %429 : vector<8x32xf32>
    %431 = arith.extui %430 : vector<8x32xi1> to vector<8x32xi32>
    %432 = arith.sitofp %431 : vector<8x32xi32> to vector<8x32xf32>
    %cst_125 = arith.constant 0.899999976 : f32
    %433 = vector.broadcast %cst_125 : f32 to vector<8x32xf32>
    %434 = arith.mulf %433, %422 : vector<8x32xf32>
    %435 = arith.addf %434, %428 : vector<8x32xf32>
    %cst_126 = arith.constant 1.000000e+00 : f32
    %436 = vector.broadcast %cst_126 : f32 to vector<8x32xf32>
    %437 = arith.mulf %432, %436 : vector<8x32xf32>
    %438 = arith.subf %435, %437 : vector<8x32xf32>
    %cst_127 = arith.constant 1.000000e+00 : f32
    %439 = vector.broadcast %cst_127 : f32 to vector<8x32xf32>
    %440 = arith.cmpf ogt, %438, %439 : vector<8x32xf32>
    %441 = arith.extui %440 : vector<8x32xi1> to vector<8x32xi32>
    %442 = arith.sitofp %441 : vector<8x32xi32> to vector<8x32xf32>
    %443 = arith.truncf %442 : vector<8x32xf32> to vector<8x32xbf16>
    %444 = vector.extract_strided_slice %410 {offsets = [16, 0], sizes = [8, 32], strides = [1, 1]} : vector<64x32xf32> to vector<8x32xf32>
    %cst_128 = arith.constant 1.000000e+00 : f32
    %445 = vector.broadcast %cst_128 : f32 to vector<8x32xf32>
    %446 = arith.cmpf ogt, %438, %445 : vector<8x32xf32>
    %447 = arith.extui %446 : vector<8x32xi1> to vector<8x32xi32>
    %448 = arith.sitofp %447 : vector<8x32xi32> to vector<8x32xf32>
    %cst_129 = arith.constant 0.899999976 : f32
    %449 = vector.broadcast %cst_129 : f32 to vector<8x32xf32>
    %450 = arith.mulf %449, %438 : vector<8x32xf32>
    %451 = arith.addf %450, %444 : vector<8x32xf32>
    %cst_130 = arith.constant 1.000000e+00 : f32
    %452 = vector.broadcast %cst_130 : f32 to vector<8x32xf32>
    %453 = arith.mulf %448, %452 : vector<8x32xf32>
    %454 = arith.subf %451, %453 : vector<8x32xf32>
    %cst_131 = arith.constant 1.000000e+00 : f32
    %455 = vector.broadcast %cst_131 : f32 to vector<8x32xf32>
    %456 = arith.cmpf ogt, %454, %455 : vector<8x32xf32>
    %457 = arith.extui %456 : vector<8x32xi1> to vector<8x32xi32>
    %458 = arith.sitofp %457 : vector<8x32xi32> to vector<8x32xf32>
    %459 = arith.truncf %458 : vector<8x32xf32> to vector<8x32xbf16>
    %460 = vector.extract_strided_slice %410 {offsets = [24, 0], sizes = [8, 32], strides = [1, 1]} : vector<64x32xf32> to vector<8x32xf32>
    %cst_132 = arith.constant 1.000000e+00 : f32
    %461 = vector.broadcast %cst_132 : f32 to vector<8x32xf32>
    %462 = arith.cmpf ogt, %454, %461 : vector<8x32xf32>
    %463 = arith.extui %462 : vector<8x32xi1> to vector<8x32xi32>
    %464 = arith.sitofp %463 : vector<8x32xi32> to vector<8x32xf32>
    %cst_133 = arith.constant 0.899999976 : f32
    %465 = vector.broadcast %cst_133 : f32 to vector<8x32xf32>
    %466 = arith.mulf %465, %454 : vector<8x32xf32>
    %467 = arith.addf %466, %460 : vector<8x32xf32>
    %cst_134 = arith.constant 1.000000e+00 : f32
    %468 = vector.broadcast %cst_134 : f32 to vector<8x32xf32>
    %469 = arith.mulf %464, %468 : vector<8x32xf32>
    %470 = arith.subf %467, %469 : vector<8x32xf32>
    %cst_135 = arith.constant 1.000000e+00 : f32
    %471 = vector.broadcast %cst_135 : f32 to vector<8x32xf32>
    %472 = arith.cmpf ogt, %470, %471 : vector<8x32xf32>
    %473 = arith.extui %472 : vector<8x32xi1> to vector<8x32xi32>
    %474 = arith.sitofp %473 : vector<8x32xi32> to vector<8x32xf32>
    %475 = arith.truncf %474 : vector<8x32xf32> to vector<8x32xbf16>
    %476 = vector.extract_strided_slice %410 {offsets = [32, 0], sizes = [8, 32], strides = [1, 1]} : vector<64x32xf32> to vector<8x32xf32>
    %cst_136 = arith.constant 1.000000e+00 : f32
    %477 = vector.broadcast %cst_136 : f32 to vector<8x32xf32>
    %478 = arith.cmpf ogt, %470, %477 : vector<8x32xf32>
    %479 = arith.extui %478 : vector<8x32xi1> to vector<8x32xi32>
    %480 = arith.sitofp %479 : vector<8x32xi32> to vector<8x32xf32>
    %cst_137 = arith.constant 0.899999976 : f32
    %481 = vector.broadcast %cst_137 : f32 to vector<8x32xf32>
    %482 = arith.mulf %481, %470 : vector<8x32xf32>
    %483 = arith.addf %482, %476 : vector<8x32xf32>
    %cst_138 = arith.constant 1.000000e+00 : f32
    %484 = vector.broadcast %cst_138 : f32 to vector<8x32xf32>
    %485 = arith.mulf %480, %484 : vector<8x32xf32>
    %486 = arith.subf %483, %485 : vector<8x32xf32>
    %cst_139 = arith.constant 1.000000e+00 : f32
    %487 = vector.broadcast %cst_139 : f32 to vector<8x32xf32>
    %488 = arith.cmpf ogt, %486, %487 : vector<8x32xf32>
    %489 = arith.extui %488 : vector<8x32xi1> to vector<8x32xi32>
    %490 = arith.sitofp %489 : vector<8x32xi32> to vector<8x32xf32>
    %491 = arith.truncf %490 : vector<8x32xf32> to vector<8x32xbf16>
    %492 = vector.extract_strided_slice %410 {offsets = [40, 0], sizes = [8, 32], strides = [1, 1]} : vector<64x32xf32> to vector<8x32xf32>
    %cst_140 = arith.constant 1.000000e+00 : f32
    %493 = vector.broadcast %cst_140 : f32 to vector<8x32xf32>
    %494 = arith.cmpf ogt, %486, %493 : vector<8x32xf32>
    %495 = arith.extui %494 : vector<8x32xi1> to vector<8x32xi32>
    %496 = arith.sitofp %495 : vector<8x32xi32> to vector<8x32xf32>
    %cst_141 = arith.constant 0.899999976 : f32
    %497 = vector.broadcast %cst_141 : f32 to vector<8x32xf32>
    %498 = arith.mulf %497, %486 : vector<8x32xf32>
    %499 = arith.addf %498, %492 : vector<8x32xf32>
    %cst_142 = arith.constant 1.000000e+00 : f32
    %500 = vector.broadcast %cst_142 : f32 to vector<8x32xf32>
    %501 = arith.mulf %496, %500 : vector<8x32xf32>
    %502 = arith.subf %499, %501 : vector<8x32xf32>
    %cst_143 = arith.constant 1.000000e+00 : f32
    %503 = vector.broadcast %cst_143 : f32 to vector<8x32xf32>
    %504 = arith.cmpf ogt, %502, %503 : vector<8x32xf32>
    %505 = arith.extui %504 : vector<8x32xi1> to vector<8x32xi32>
    %506 = arith.sitofp %505 : vector<8x32xi32> to vector<8x32xf32>
    %507 = arith.truncf %506 : vector<8x32xf32> to vector<8x32xbf16>
    %508 = vector.extract_strided_slice %410 {offsets = [48, 0], sizes = [8, 32], strides = [1, 1]} : vector<64x32xf32> to vector<8x32xf32>
    %cst_144 = arith.constant 1.000000e+00 : f32
    %509 = vector.broadcast %cst_144 : f32 to vector<8x32xf32>
    %510 = arith.cmpf ogt, %502, %509 : vector<8x32xf32>
    %511 = arith.extui %510 : vector<8x32xi1> to vector<8x32xi32>
    %512 = arith.sitofp %511 : vector<8x32xi32> to vector<8x32xf32>
    %cst_145 = arith.constant 0.899999976 : f32
    %513 = vector.broadcast %cst_145 : f32 to vector<8x32xf32>
    %514 = arith.mulf %513, %502 : vector<8x32xf32>
    %515 = arith.addf %514, %508 : vector<8x32xf32>
    %cst_146 = arith.constant 1.000000e+00 : f32
    %516 = vector.broadcast %cst_146 : f32 to vector<8x32xf32>
    %517 = arith.mulf %512, %516 : vector<8x32xf32>
    %518 = arith.subf %515, %517 : vector<8x32xf32>
    %cst_147 = arith.constant 1.000000e+00 : f32
    %519 = vector.broadcast %cst_147 : f32 to vector<8x32xf32>
    %520 = arith.cmpf ogt, %518, %519 : vector<8x32xf32>
    %521 = arith.extui %520 : vector<8x32xi1> to vector<8x32xi32>
    %522 = arith.sitofp %521 : vector<8x32xi32> to vector<8x32xf32>
    %523 = arith.truncf %522 : vector<8x32xf32> to vector<8x32xbf16>
    %524 = vector.extract_strided_slice %410 {offsets = [56, 0], sizes = [8, 32], strides = [1, 1]} : vector<64x32xf32> to vector<8x32xf32>
    %cst_148 = arith.constant 1.000000e+00 : f32
    %525 = vector.broadcast %cst_148 : f32 to vector<8x32xf32>
    %526 = arith.cmpf ogt, %518, %525 : vector<8x32xf32>
    %527 = arith.extui %526 : vector<8x32xi1> to vector<8x32xi32>
    %528 = arith.sitofp %527 : vector<8x32xi32> to vector<8x32xf32>
    %cst_149 = arith.constant 0.899999976 : f32
    %529 = vector.broadcast %cst_149 : f32 to vector<8x32xf32>
    %530 = arith.mulf %529, %518 : vector<8x32xf32>
    %531 = arith.addf %530, %524 : vector<8x32xf32>
    %cst_150 = arith.constant 1.000000e+00 : f32
    %532 = vector.broadcast %cst_150 : f32 to vector<8x32xf32>
    %533 = arith.mulf %528, %532 : vector<8x32xf32>
    %534 = arith.subf %531, %533 : vector<8x32xf32>
    %cst_151 = arith.constant 1.000000e+00 : f32
    %535 = vector.broadcast %cst_151 : f32 to vector<8x32xf32>
    %536 = arith.cmpf ogt, %534, %535 : vector<8x32xf32>
    %537 = arith.extui %536 : vector<8x32xi1> to vector<8x32xi32>
    %538 = arith.sitofp %537 : vector<8x32xi32> to vector<8x32xf32>
    %539 = arith.truncf %538 : vector<8x32xf32> to vector<8x32xbf16>
    %540 = tpu.concatenate %427, %443, %459, %475, %491, %507, %523, %539 in 0 : vector<8x32xbf16>, vector<8x32xbf16>, vector<8x32xbf16>, vector<8x32xbf16>, vector<8x32xbf16>, vector<8x32xbf16>, vector<8x32xbf16>, vector<8x32xbf16> -> vector<64x32xbf16>
    %541 = tpu.concatenate %135, %270, %405, %540 in 1 : vector<64x32xbf16>, vector<64x32xbf16>, vector<64x32xbf16>, vector<64x32xbf16> -> vector<64x128xbf16>
    %c0_152 = arith.constant 0 : index
    %c0_153 = arith.constant 0 : index
    %542 = vector.load %arg9[%c0_152, %c0_153] : memref<64x128xbf16, #tpu.memory_space<vmem>>, vector<64x128xbf16>
    tpu.vector_store %arg9[%c0_152, %c0_153], %541 {strides = array<i32>} : memref<64x128xbf16, #tpu.memory_space<vmem>>, vector<64x128xbf16>,
    %c0_154 = arith.constant 0 : index
    %c0_155 = arith.constant 0 : index
    %543 = vector.load %arg10[%c0_154, %c0_155] : memref<8x32xf32, #tpu.memory_space<vmem>>, vector<8x32xf32>
    tpu.vector_store %arg10[%c0_154, %c0_155], %534 {strides = array<i32>} : memref<8x32xf32, #tpu.memory_space<vmem>>, vector<8x32xf32>,
    return
  }
}

</mosaic_0001>

<llo_original>
// kernel: tpu_custom_call.1
$region0: #{tpu_custom_call.1}
  #allocation0 [shape = 'u32[]', space=smem, size = 0x4, offset = 0x4, fixed_abs, tag = 'smem constant byte address 0x4 - core index']
  #allocation1 [shape = 'u32[72,128]{1,0:T(1,128)}', space=vmem, size = 0x9000, scoped, tag = 'internal scratch']
  %s0 = inlined_call_operand.vmem [shape: bf16[64,16], index: 0, kind: input, shape index: {}]
  %s1 = inlined_call_operand.vmem [shape: bf16[16,32], index: 1, kind: input, shape index: {}]
  %s2 = inlined_call_operand.vmem [shape: f32[1,32], index: 2, kind: input, shape index: {}]
  %s3 = inlined_call_operand.vmem [shape: bf16[32,32], index: 3, kind: input, shape index: {}]
  %s4 = inlined_call_operand.vmem [shape: f32[1,32], index: 4, kind: input, shape index: {}]
  %s5 = inlined_call_operand.vmem [shape: bf16[32,32], index: 5, kind: input, shape index: {}]
  %s6 = inlined_call_operand.vmem [shape: f32[1,32], index: 6, kind: input, shape index: {}]
  %s7 = inlined_call_operand.hbm [shape: bf16[32,32], index: 7, kind: input, shape index: {}]
  %s8 = inlined_call_operand.vmem [shape: f32[1,32], index: 8, kind: input, shape index: {}]
  %s9 = inlined_call_operand.hbm [shape: bf16[64,128], index: 9, kind: output, shape index: {0}]
  %s10 = inlined_call_operand.hbm [shape: f32[8,32], index: 10, kind: output, shape index: {1}]
  %11 = xla_tuple %s9, %s10
  %s12 = sld [smem:[#allocation0]]
  $region58: #{tpu_custom_call.1} parent=0
    _
  %s14 = ssub.s32 1, %s12
  %s15 = scalar_select 0, %s14, %s12
  $region1: #{tpu_custom_call.1} parent=0
    #allocation2 [shape = 'u8[8192]{0}', space=vmem, size = 0x2000, scoped, tag = 'input window, operand 7, single buffered']
    #allocation3 [shape = 's32[1]{0}', space=sflag, size = 0x4, scoped, tag = 'scoped memory for tpu_custom_call.1']
    #allocation4 [shape = 's32[1]{0}', space=sflag, size = 0x4, scoped, tag = 'scoped memory for tpu_custom_call.1']
    #allocation5 [shape = 'u8[16384]{0}', space=vmem, size = 0x4000, scoped, tag = 'output window, operand 0, single buffered']
    #allocation6 [shape = 'u8[4096]{0}', space=vmem, size = 0x1000, scoped, tag = 'output window, operand 1, single buffered']
    #allocation7 [shape = 's32[1]{0}', space=sflag, size = 0x4, scoped, tag = 'scoped memory for tpu_custom_call.1']
    %16 = vsyncpa [#allocation3], 0
    %17 = vsyncpa [#allocation4], 0
    %18 = vsyncpa [#allocation7], 0
    // Predicated region
    $region2: #{tpu_custom_call.1} parent=1 // pred_check
      _
    $region3: #{tpu_custom_call.1} parent=1 // pred_check_branch
      %20 = sbr.rel (0) target = $region5
    $region4: #{tpu_custom_call.1} parent=1 // pred_region
      _
    $region5: #{tpu_custom_call.1} parent=1 // pred_fallthru
      _
    // Predicated region
    $region6: #{tpu_custom_call.1} parent=1 // pred_check
      _
    $region7: #{tpu_custom_call.1} parent=1 // pred_check_branch
      %22 = sbr.rel (0) target = $region9
    $region8: #{tpu_custom_call.1} parent=1 // pred_region
      _
    $region9: #{tpu_custom_call.1} parent=1 // pred_fallthru
      _
    // Predicated region
    $region10: #{tpu_custom_call.1} parent=1 // pred_check
      _
    $region11: #{tpu_custom_call.1} parent=1 // pred_check_branch
      %24 = sbr.rel (0) target = $region13
    $region12: #{tpu_custom_call.1} parent=1 // pred_region
      _
    $region13: #{tpu_custom_call.1} parent=1 // pred_fallthru
      _
    // Predicated region
    $region14: #{tpu_custom_call.1} parent=1 // pred_check
      _
    $region15: #{tpu_custom_call.1} parent=1 // pred_check_branch
      %26 = sbr.rel (0) target = $region17
    $region16: #{tpu_custom_call.1} parent=1 // pred_region
      _
    $region17: #{tpu_custom_call.1} parent=1 // pred_fallthru
      _
    // Predicated region
    $region18: #{tpu_custom_call.1} parent=1 // pred_check
      _
    $region19: #{tpu_custom_call.1} parent=1 // pred_check_branch
      %28 = sbr.rel (0) target = $region21
    $region20: #{tpu_custom_call.1} parent=1 // pred_region
      _
    $region21: #{tpu_custom_call.1} parent=1 // pred_fallthru
      _
    // Predicated region
    $region22: #{tpu_custom_call.1} parent=1 // pred_check
      _
    $region23: #{tpu_custom_call.1} parent=1 // pred_check_branch
      %30 = sbr.rel (0) target = $region25
    $region24: #{tpu_custom_call.1} parent=1 // pred_region
      _
    $region25: #{tpu_custom_call.1} parent=1 // pred_fallthru
      _
    // Predicated region
    $region26: #{tpu_custom_call.1} parent=1 // pred_check
      _
    $region27: #{tpu_custom_call.1} parent=1 // pred_check_branch
      %32 = sbr.rel (0) target = $region29
    $region28: #{tpu_custom_call.1} parent=1 // pred_region
      _
    $region29: #{tpu_custom_call.1} parent=1 // pred_fallthru
      _
    // Predicated region
    $region30: #{tpu_custom_call.1} parent=1 // pred_check
      _
    $region31: #{tpu_custom_call.1} parent=1 // pred_check_branch
      %34 = sbr.rel (0) target = $region33
    $region32: #{tpu_custom_call.1} parent=1 // pred_region
      %36 = vsyncadd [#allocation3], 0
      %s37 = sshll.u32 %s7, 4
      %s38 = int_to_ptr.hbm [resolvable:$true] %s37
      %s39 = sshll.u32 [#allocation2], 4
      %s40 = int_to_ptr.vmem [resolvable:$true] %s39
      %45 = dma.hbm_to_vmem [thread:$0]  %s38, 256, %s40, [#allocation3], 64, 64, 4
    $region33: #{tpu_custom_call.1} parent=1 // pred_fallthru
      _
    // Predicated region
    $region34: #{tpu_custom_call.1} parent=1 // pred_check
      _
    $region35: #{tpu_custom_call.1} parent=1 // pred_check_branch
      %47 = sbr.rel (0) target = $region37
    $region36: #{tpu_custom_call.1} parent=1 // pred_region
      _
    $region37: #{tpu_custom_call.1} parent=1 // pred_fallthru
      _
    // Predicated region
    $region38: #{tpu_custom_call.1} parent=1 // pred_check
      _
    $region39: #{tpu_custom_call.1} parent=1 // pred_check_branch
      %49 = sbr.rel (0) target = $region41
    $region40: #{tpu_custom_call.1} parent=1 // pred_region
      %51 = dma.done [#allocation3], 256
    $region41: #{tpu_custom_call.1} parent=1 // pred_fallthru
      _
    %v53 = vld [vmem:[%s0] sm:$0xf]
    %v54 = vld [vmem:[%s0 + $0x4] sm:$0xf]
    %v55 = vld [vmem:[%s0 + $0x8] sm:$0xf]
    %v56 = vld [vmem:[%s0 + $0xc] sm:$0xf]
    %v57 = vld [vmem:[%s0 + $0x10] sm:$0xf]
    %v58 = vld [vmem:[%s0 + $0x14] sm:$0xf]
    %v59 = vld [vmem:[%s0 + $0x18] sm:$0xf]
    %v60 = vld [vmem:[%s0 + $0x1c] sm:$0xf]
    %v61 = vld [vmem:[%s1] sm:$0xf]
    %v62 = vld [vmem:[%s1 + $0x4] sm:$0xf]
    %v63 = vld [vmem:[%s2] sm:$0x1]
    %v65 = vperm.slane %v63, 0
    %v75 = vunpack.c.l.b16 %v53
    %v76 = vunpack.c.l.b16 %v54
    %v77 = vunpack.c.l.b16 %v55
    %v78 = vunpack.c.l.b16 %v56
    %v79 = vunpack.c.l.b16 %v57
    %v80 = vunpack.c.l.b16 %v58
    %v81 = vunpack.c.l.b16 %v59
    %v82 = vunpack.c.l.b16 %v60
    %v83 = vpack.c.b16 %v76, %v75
    %v84 = vpack.c.b16 %v78, %v77
    %v85 = vpack.c.b16 %v80, %v79
    %v86 = vpack.c.b16 %v82, %v81
    %v89 = vunpack.c.l.b16 %v61
    %v90 = vunpack.c.l.b16 %v62
    %v91 = vpack.c.b16 %v90, %v89
    %vm93 = vcmask 130048
    %v95 = vsel %vm93, %v83, 0
    %v98 = vsel %vm93, %v84, 0
    %v101 = vsel %vm93, %v85, 0
    %v104 = vsel %vm93, %v86, 0
    %106 = vmatpush.bf16.msra.mxu0 0
    %107 = vmatpush.bf16.msra.mxu0 0
    %108 = vmatpush.bf16.msra.mxu0 0
    %109 = vmatpush.bf16.msra.mxu0 0
    %110 = vmatpush.bf16.msra.mxu0 0
    %111 = vmatpush.bf16.msra.mxu0 0
    %112 = vmatpush.bf16.msra.mxu0 0
    %113 = vmatpush.bf16.msra.mxu0 %v91
    %114 = vmatmul.bf16.gmra.mxu0 %v95
    %v115 = vpop.f32.mrf.mxu0
    %v116 = vadd.f32 %v65, %v115
    %v117 = vpop.f32.mrf.mxu0
    %v118 = vadd.f32 %v65, %v117
    %119 = vmatmul.bf16.gmra.mxu0 %v98
    %v120 = vpop.f32.mrf.mxu0
    %v121 = vadd.f32 %v65, %v120
    %v122 = vpop.f32.mrf.mxu0
    %v123 = vadd.f32 %v65, %v122
    %124 = vmatmul.bf16.gmra.mxu0 %v101
    %v125 = vpop.f32.mrf.mxu0
    %v126 = vadd.f32 %v65, %v125
    %v127 = vpop.f32.mrf.mxu0
    %v128 = vadd.f32 %v65, %v127
    %129 = vmatmul.bf16.gmra.mxu0 %v104
    %v130 = vpop.f32.mrf.mxu0
    %v131 = vadd.f32 %v65, %v130
    %v132 = vpop.f32.mrf.mxu0
    %v133 = vadd.f32 %v65, %v132
    %134 = vdwg.mxu0
    %vm135 = vcmp.gt.f32.partialorder 0.0, 1.0
    %v136 = vsel %vm135, 1, 0
    %v137 = vcvt.s32.f32 %v136
    %v138 = vadd.f32 %v116, 0.0
    %v139 = vsub.f32 %v138, %v137
    %vm140 = vcmp.gt.f32.partialorder %v139, 1.0
    %v141 = vsel %vm140, 1, 0
    %v142 = vcvt.s32.f32 %v141
    %v143 = vpack.c.bf16 %v142, %v142
    %v144 = vmul.f32 %v139, 0.9
    %v145 = vadd.f32 %v144, %v118
    %v146 = vsub.f32 %v145, %v142
    %vm147 = vcmp.gt.f32.partialorder %v146, 1.0
    %v148 = vsel %vm147, 1, 0
    %v149 = vcvt.s32.f32 %v148
    %v150 = vpack.c.bf16 %v149, %v149
    %v151 = vmul.f32 %v146, 0.9
    %v152 = vadd.f32 %v151, %v121
    %v153 = vsub.f32 %v152, %v149
    %vm154 = vcmp.gt.f32.partialorder %v153, 1.0
    %v155 = vsel %vm154, 1, 0
    %v156 = vcvt.s32.f32 %v155
    %v157 = vpack.c.bf16 %v156, %v156
    %v158 = vmul.f32 %v153, 0.9
    %v159 = vadd.f32 %v158, %v123
    %v160 = vsub.f32 %v159, %v156
    %vm161 = vcmp.gt.f32.partialorder %v160, 1.0
    %v162 = vsel %vm161, 1, 0
    %v163 = vcvt.s32.f32 %v162
    %v164 = vpack.c.bf16 %v163, %v163
    %v165 = vmul.f32 %v160, 0.9
    %v166 = vadd.f32 %v165, %v126
    %v167 = vsub.f32 %v166, %v163
    %vm168 = vcmp.gt.f32.partialorder %v167, 1.0
    %v169 = vsel %vm168, 1, 0
    %v170 = vcvt.s32.f32 %v169
    %v171 = vpack.c.bf16 %v170, %v170
    %v172 = vmul.f32 %v167, 0.9
    %v173 = vadd.f32 %v172, %v128
    %v174 = vsub.f32 %v173, %v170
    %vm175 = vcmp.gt.f32.partialorder %v174, 1.0
    %v176 = vsel %vm175, 1, 0
    %v177 = vcvt.s32.f32 %v176
    %v178 = vpack.c.bf16 %v177, %v177
    %v179 = vmul.f32 %v174, 0.9
    %v180 = vadd.f32 %v179, %v131
    %v181 = vsub.f32 %v180, %v177
    %vm182 = vcmp.gt.f32.partialorder %v181, 1.0
    %v183 = vsel %vm182, 1, 0
    %v184 = vcvt.s32.f32 %v183
    %v185 = vpack.c.bf16 %v184, %v184
    %v186 = vmul.f32 %v181, 0.9
    %v187 = vadd.f32 %v186, %v133
    %v188 = vsub.f32 %v187, %v184
    %vm189 = vcmp.gt.f32.partialorder %v188, 1.0
    %v190 = vsel %vm189, 1, 0
    %v191 = vcvt.s32.f32 %v190
    %v192 = vpack.c.bf16 %v191, %v191
    %v194 = vunpack.c.l.b16 %v150
    %v195 = vpack.c.b16 %v194, %v194
    %v197 = vunpack.c.l.b16 %v164
    %v198 = vpack.c.b16 %v197, %v197
    %v200 = vunpack.c.l.b16 %v178
    %v201 = vpack.c.b16 %v200, %v200
    %v203 = vunpack.c.l.b16 %v192
    %v204 = vpack.c.b16 %v203, %v203
    %vm205 = vcmask 1043456
    %v208 = vsel %vm205, %v143, %v195
    %v211 = vsel %vm205, %v157, %v198
    %v214 = vsel %vm205, %v171, %v201
    %v217 = vsel %vm205, %v185, %v204
    %v218 = vld [vmem:[%s3] sm:$0xf]
    %v219 = vld [vmem:[%s3 + $0x4] sm:$0xf]
    %v220 = vld [vmem:[%s3 + $0x8] sm:$0xf]
    %v221 = vld [vmem:[%s3 + $0xc] sm:$0xf]
    %v222 = vld [vmem:[%s4] sm:$0x1]
    %v224 = vperm.slane %v222, 0
    %v230 = vunpack.c.l.b16 %v218
    %v231 = vunpack.c.l.b16 %v219
    %v232 = vunpack.c.l.b16 %v220
    %v233 = vunpack.c.l.b16 %v221
    %v234 = vpack.c.b16 %v231, %v230
    %v235 = vpack.c.b16 %v233, %v232
    %vm238 = vcmask 261120
    %v239 = vsel %vm238, %v208, 0
    %v241 = vsel %vm238, %v211, 0
    %v243 = vsel %vm238, %v214, 0
    %v245 = vsel %vm238, %v217, 0
    %247 = vmatpush.bf16.msra.mxu0 0
    %248 = vmatpush.bf16.msra.mxu0 0
    %249 = vmatpush.bf16.msra.mxu0 0
    %250 = vmatpush.bf16.msra.mxu0 0
    %251 = vmatpush.bf16.msra.mxu0 0
    %252 = vmatpush.bf16.msra.mxu0 0
    %253 = vmatpush.bf16.msra.mxu0 %v235
    %254 = vmatpush.bf16.msra.mxu0 %v234
    %255 = vmatmul.bf16.gmra.mxu0 %v239
    %v256 = vpop.f32.mrf.mxu0
    %v257 = vadd.f32 %v224, %v256
    %v258 = vpop.f32.mrf.mxu0
    %v259 = vadd.f32 %v224, %v258
    %260 = vmatmul.bf16.gmra.mxu0 %v241
    %v261 = vpop.f32.mrf.mxu0
    %v262 = vadd.f32 %v224, %v261
    %v263 = vpop.f32.mrf.mxu0
    %v264 = vadd.f32 %v224, %v263
    %265 = vmatmul.bf16.gmra.mxu0 %v243
    %v266 = vpop.f32.mrf.mxu0
    %v267 = vadd.f32 %v224, %v266
    %v268 = vpop.f32.mrf.mxu0
    %v269 = vadd.f32 %v224, %v268
    %270 = vmatmul.bf16.gmra.mxu0 %v245
    %v271 = vpop.f32.mrf.mxu0
    %v272 = vadd.f32 %v224, %v271
    %v273 = vpop.f32.mrf.mxu0
    %v274 = vadd.f32 %v224, %v273
    %275 = vdwg.mxu0
    %v276 = vadd.f32 %v257, 0.0
    %v277 = vsub.f32 %v276, %v137
    %vm278 = vcmp.gt.f32.partialorder %v277, 1.0
    %v279 = vsel %vm278, 1, 0
    %v280 = vcvt.s32.f32 %v279
    %v281 = vpack.c.bf16 %v280, %v280
    %v282 = vmul.f32 %v277, 0.9
    %v283 = vadd.f32 %v282, %v259
    %v284 = vsub.f32 %v283, %v280
    %vm285 = vcmp.gt.f32.partialorder %v284, 1.0
    %v286 = vsel %vm285, 1, 0
    %v287 = vcvt.s32.f32 %v286
    %v288 = vpack.c.bf16 %v287, %v287
    %v289 = vmul.f32 %v284, 0.9
    %v290 = vadd.f32 %v289, %v262
    %v291 = vsub.f32 %v290, %v287
    %vm292 = vcmp.gt.f32.partialorder %v291, 1.0
    %v293 = vsel %vm292, 1, 0
    %v294 = vcvt.s32.f32 %v293
    %v295 = vpack.c.bf16 %v294, %v294
    %v296 = vmul.f32 %v291, 0.9
    %v297 = vadd.f32 %v296, %v264
    %v298 = vsub.f32 %v297, %v294
    %vm299 = vcmp.gt.f32.partialorder %v298, 1.0
    %v300 = vsel %vm299, 1, 0
    %v301 = vcvt.s32.f32 %v300
    %v302 = vpack.c.bf16 %v301, %v301
    %v303 = vmul.f32 %v298, 0.9
    %v304 = vadd.f32 %v303, %v267
    %v305 = vsub.f32 %v304, %v301
    %vm306 = vcmp.gt.f32.partialorder %v305, 1.0
    %v307 = vsel %vm306, 1, 0
    %v308 = vcvt.s32.f32 %v307
    %v309 = vpack.c.bf16 %v308, %v308
    %v310 = vmul.f32 %v305, 0.9
    %v311 = vadd.f32 %v310, %v269
    %v312 = vsub.f32 %v311, %v308
    %vm313 = vcmp.gt.f32.partialorder %v312, 1.0
    %v314 = vsel %vm313, 1, 0
    %v315 = vcvt.s32.f32 %v314
    %v316 = vpack.c.bf16 %v315, %v315
    %v317 = vmul.f32 %v312, 0.9
    %v318 = vadd.f32 %v317, %v272
    %v319 = vsub.f32 %v318, %v315
    %vm320 = vcmp.gt.f32.partialorder %v319, 1.0
    %v321 = vsel %vm320, 1, 0
    %v322 = vcvt.s32.f32 %v321
    %v323 = vpack.c.bf16 %v322, %v322
    %v324 = vmul.f32 %v319, 0.9
    %v325 = vadd.f32 %v324, %v274
    %v326 = vsub.f32 %v325, %v322
    %vm327 = vcmp.gt.f32.partialorder %v326, 1.0
    %v328 = vsel %vm327, 1, 0
    %v329 = vcvt.s32.f32 %v328
    %v330 = vpack.c.bf16 %v329, %v329
    %v332 = vunpack.c.l.b16 %v288
    %v333 = vpack.c.b16 %v332, %v332
    %v335 = vunpack.c.l.b16 %v302
    %v336 = vpack.c.b16 %v335, %v335
    %v338 = vunpack.c.l.b16 %v316
    %v339 = vpack.c.b16 %v338, %v338
    %v341 = vunpack.c.l.b16 %v330
    %v342 = vpack.c.b16 %v341, %v341
    %v345 = vsel %vm205, %v281, %v333
    %v348 = vsel %vm205, %v295, %v336
    %v351 = vsel %vm205, %v309, %v339
    %v354 = vsel %vm205, %v323, %v342
    %v355 = vld [vmem:[%s5] sm:$0xf]
    %v356 = vld [vmem:[%s5 + $0x4] sm:$0xf]
    %v357 = vld [vmem:[%s5 + $0x8] sm:$0xf]
    %v358 = vld [vmem:[%s5 + $0xc] sm:$0xf]
    %v359 = vld [vmem:[%s6] sm:$0x1]
    %v361 = vperm.slane %v359, 0
    %v367 = vunpack.c.l.b16 %v355
    %v368 = vunpack.c.l.b16 %v356
    %v369 = vunpack.c.l.b16 %v357
    %v370 = vunpack.c.l.b16 %v358
    %v371 = vpack.c.b16 %v368, %v367
    %v372 = vpack.c.b16 %v370, %v369
    %v375 = vsel %vm238, %v345, 0
    %v377 = vsel %vm238, %v348, 0
    %v379 = vsel %vm238, %v351, 0
    %v381 = vsel %vm238, %v354, 0
    %383 = vmatpush.bf16.msra.mxu0 0
    %384 = vmatpush.bf16.msra.mxu0 0
    %385 = vmatpush.bf16.msra.mxu0 0
    %386 = vmatpush.bf16.msra.mxu0 0
    %387 = vmatpush.bf16.msra.mxu0 0
    %388 = vmatpush.bf16.msra.mxu0 0
    %389 = vmatpush.bf16.msra.mxu0 %v372
    %390 = vmatpush.bf16.msra.mxu0 %v371
    %391 = vmatmul.bf16.gmra.mxu0 %v375
    %v392 = vpop.f32.mrf.mxu0
    %v393 = vadd.f32 %v361, %v392
    %v394 = vpop.f32.mrf.mxu0
    %v395 = vadd.f32 %v361, %v394
    %396 = vmatmul.bf16.gmra.mxu0 %v377
    %v397 = vpop.f32.mrf.mxu0
    %v398 = vadd.f32 %v361, %v397
    %v399 = vpop.f32.mrf.mxu0
    %v400 = vadd.f32 %v361, %v399
    %401 = vmatmul.bf16.gmra.mxu0 %v379
    %v402 = vpop.f32.mrf.mxu0
    %v403 = vadd.f32 %v361, %v402
    %v404 = vpop.f32.mrf.mxu0
    %v405 = vadd.f32 %v361, %v404
    %406 = vmatmul.bf16.gmra.mxu0 %v381
    %v407 = vpop.f32.mrf.mxu0
    %v408 = vadd.f32 %v361, %v407
    %v409 = vpop.f32.mrf.mxu0
    %v410 = vadd.f32 %v361, %v409
    %411 = vdwg.mxu0
    %v412 = vadd.f32 %v393, 0.0
    %v413 = vsub.f32 %v412, %v137
    %vm414 = vcmp.gt.f32.partialorder %v413, 1.0
    %v415 = vsel %vm414, 1, 0
    %v416 = vcvt.s32.f32 %v415
    %v417 = vpack.c.bf16 %v416, %v416
    %v418 = vmul.f32 %v413, 0.9
    %v419 = vadd.f32 %v418, %v395
    %v420 = vsub.f32 %v419, %v416
    %vm421 = vcmp.gt.f32.partialorder %v420, 1.0
    %v422 = vsel %vm421, 1, 0
    %v423 = vcvt.s32.f32 %v422
    %v424 = vpack.c.bf16 %v423, %v423
    %v425 = vmul.f32 %v420, 0.9
    %v426 = vadd.f32 %v425, %v398
    %v427 = vsub.f32 %v426, %v423
    %vm428 = vcmp.gt.f32.partialorder %v427, 1.0
    %v429 = vsel %vm428, 1, 0
    %v430 = vcvt.s32.f32 %v429
    %v431 = vpack.c.bf16 %v430, %v430
    %v432 = vmul.f32 %v427, 0.9
    %v433 = vadd.f32 %v432, %v400
    %v434 = vsub.f32 %v433, %v430
    %vm435 = vcmp.gt.f32.partialorder %v434, 1.0
    %v436 = vsel %vm435, 1, 0
    %v437 = vcvt.s32.f32 %v436
    %v438 = vpack.c.bf16 %v437, %v437
    %v439 = vmul.f32 %v434, 0.9
    %v440 = vadd.f32 %v439, %v403
    %v441 = vsub.f32 %v440, %v437
    %vm442 = vcmp.gt.f32.partialorder %v441, 1.0
    %v443 = vsel %vm442, 1, 0
    %v444 = vcvt.s32.f32 %v443
    %v445 = vpack.c.bf16 %v444, %v444
    %v446 = vmul.f32 %v441, 0.9
    %v447 = vadd.f32 %v446, %v405
    %v448 = vsub.f32 %v447, %v444
    %vm449 = vcmp.gt.f32.partialorder %v448, 1.0
    %v450 = vsel %vm449, 1, 0
    %v451 = vcvt.s32.f32 %v450
    %v452 = vpack.c.bf16 %v451, %v451
    %v453 = vmul.f32 %v448, 0.9
    %v454 = vadd.f32 %v453, %v408
    %v455 = vsub.f32 %v454, %v451
    %vm456 = vcmp.gt.f32.partialorder %v455, 1.0
    %v457 = vsel %vm456, 1, 0
    %v458 = vcvt.s32.f32 %v457
    %v459 = vpack.c.bf16 %v458, %v458
    %v460 = vmul.f32 %v455, 0.9
    %v461 = vadd.f32 %v460, %v410
    %v462 = vsub.f32 %v461, %v458
    %vm463 = vcmp.gt.f32.partialorder %v462, 1.0
    %v464 = vsel %vm463, 1, 0
    %v465 = vcvt.s32.f32 %v464
    %v466 = vpack.c.bf16 %v465, %v465
    %v468 = vunpack.c.l.b16 %v424
    %v469 = vpack.c.b16 %v468, %v468
    %v471 = vunpack.c.l.b16 %v438
    %v472 = vpack.c.b16 %v471, %v471
    %v474 = vunpack.c.l.b16 %v452
    %v475 = vpack.c.b16 %v474, %v474
    %v477 = vunpack.c.l.b16 %v466
    %v478 = vpack.c.b16 %v477, %v477
    %v481 = vsel %vm205, %v417, %v469
    %v484 = vsel %vm205, %v431, %v472
    %v487 = vsel %vm205, %v445, %v475
    %v490 = vsel %vm205, %v459, %v478
    %v491 = vld [vmem:[#allocation2] sm:$0xf]
    %v492 = vld [vmem:[#allocation2 + $0x4] sm:$0xf]
    %v493 = vld [vmem:[#allocation2 + $0x8] sm:$0xf]
    %v494 = vld [vmem:[#allocation2 + $0xc] sm:$0xf]
    %v495 = vld [vmem:[%s8] sm:$0x1]
    %v497 = vperm.slane %v495, 0
    %v503 = vunpack.c.l.b16 %v491
    %v504 = vunpack.c.l.b16 %v492
    %v505 = vunpack.c.l.b16 %v493
    %v506 = vunpack.c.l.b16 %v494
    %v507 = vpack.c.b16 %v504, %v503
    %v508 = vpack.c.b16 %v506, %v505
    %v511 = vsel %vm238, %v481, 0
    %v513 = vsel %vm238, %v484, 0
    %v515 = vsel %vm238, %v487, 0
    %v517 = vsel %vm238, %v490, 0
    %519 = vmatpush.bf16.msra.mxu0 0
    %520 = vmatpush.bf16.msra.mxu0 0
    %521 = vmatpush.bf16.msra.mxu0 0
    %522 = vmatpush.bf16.msra.mxu0 0
    %523 = vmatpush.bf16.msra.mxu0 0
    %524 = vmatpush.bf16.msra.mxu0 0
    %525 = vmatpush.bf16.msra.mxu0 %v508
    %526 = vmatpush.bf16.msra.mxu0 %v507
    %527 = vmatmul.bf16.gmra.mxu0 %v511
    %v528 = vpop.f32.mrf.mxu0
    %v529 = vadd.f32 %v497, %v528
    %v530 = vpop.f32.mrf.mxu0
    %v531 = vadd.f32 %v497, %v530
    %532 = vmatmul.bf16.gmra.mxu0 %v513
    %v533 = vpop.f32.mrf.mxu0
    %v534 = vadd.f32 %v497, %v533
    %v535 = vpop.f32.mrf.mxu0
    %v536 = vadd.f32 %v497, %v535
    %537 = vmatmul.bf16.gmra.mxu0 %v515
    %v538 = vpop.f32.mrf.mxu0
    %v539 = vadd.f32 %v497, %v538
    %v540 = vpop.f32.mrf.mxu0
    %v541 = vadd.f32 %v497, %v540
    %542 = vmatmul.bf16.gmra.mxu0 %v517
    %v543 = vpop.f32.mrf.mxu0
    %v544 = vadd.f32 %v497, %v543
    %v545 = vpop.f32.mrf.mxu0
    %v546 = vadd.f32 %v497, %v545
    %547 = vdwg.mxu0
    %v548 = vadd.f32 %v529, 0.0
    %v549 = vsub.f32 %v548, %v137
    %vm550 = vcmp.gt.f32.partialorder %v549, 1.0
    %v551 = vsel %vm550, 1, 0
    %v552 = vcvt.s32.f32 %v551
    %v553 = vpack.c.bf16 %v552, %v552
    %v554 = vmul.f32 %v549, 0.9
    %v555 = vadd.f32 %v554, %v531
    %v556 = vsub.f32 %v555, %v552
    %vm557 = vcmp.gt.f32.partialorder %v556, 1.0
    %v558 = vsel %vm557, 1, 0
    %v559 = vcvt.s32.f32 %v558
    %v560 = vpack.c.bf16 %v559, %v559
    %v561 = vmul.f32 %v556, 0.9
    %v562 = vadd.f32 %v561, %v534
    %v563 = vsub.f32 %v562, %v559
    %vm564 = vcmp.gt.f32.partialorder %v563, 1.0
    %v565 = vsel %vm564, 1, 0
    %v566 = vcvt.s32.f32 %v565
    %v567 = vpack.c.bf16 %v566, %v566
    %v568 = vmul.f32 %v563, 0.9
    %v569 = vadd.f32 %v568, %v536
    %v570 = vsub.f32 %v569, %v566
    %vm571 = vcmp.gt.f32.partialorder %v570, 1.0
    %v572 = vsel %vm571, 1, 0
    %v573 = vcvt.s32.f32 %v572
    %v574 = vpack.c.bf16 %v573, %v573
    %v575 = vmul.f32 %v570, 0.9
    %v576 = vadd.f32 %v575, %v539
    %v577 = vsub.f32 %v576, %v573
    %vm578 = vcmp.gt.f32.partialorder %v577, 1.0
    %v579 = vsel %vm578, 1, 0
    %v580 = vcvt.s32.f32 %v579
    %v581 = vpack.c.bf16 %v580, %v580
    %v582 = vmul.f32 %v577, 0.9
    %v583 = vadd.f32 %v582, %v541
    %v584 = vsub.f32 %v583, %v580
    %vm585 = vcmp.gt.f32.partialorder %v584, 1.0
    %v586 = vsel %vm585, 1, 0
    %v587 = vcvt.s32.f32 %v586
    %v588 = vpack.c.bf16 %v587, %v587
    %v589 = vmul.f32 %v584, 0.9
    %v590 = vadd.f32 %v589, %v544
    %v591 = vsub.f32 %v590, %v587
    %vm592 = vcmp.gt.f32.partialorder %v591, 1.0
    %v593 = vsel %vm592, 1, 0
    %v594 = vcvt.s32.f32 %v593
    %v595 = vpack.c.bf16 %v594, %v594
    %v596 = vmul.f32 %v591, 0.9
    %v597 = vadd.f32 %v596, %v546
    %v598 = vsub.f32 %v597, %v594
    %vm599 = vcmp.gt.f32.partialorder %v598, 1.0
    %v600 = vsel %vm599, 1, 0
    %v601 = vcvt.s32.f32 %v600
    %v602 = vpack.c.bf16 %v601, %v601
    %v604 = vunpack.c.l.b16 %v560
    %v605 = vpack.c.b16 %v604, %v604
    %v607 = vunpack.c.l.b16 %v574
    %v608 = vpack.c.b16 %v607, %v607
    %v610 = vunpack.c.l.b16 %v588
    %v611 = vpack.c.b16 %v610, %v610
    %v613 = vunpack.c.l.b16 %v602
    %v614 = vpack.c.b16 %v613, %v613
    %v617 = vsel %vm205, %v553, %v605
    %v620 = vsel %vm205, %v567, %v608
    %v623 = vsel %vm205, %v581, %v611
    %v626 = vsel %vm205, %v595, %v614
    %631 = vrot.lane.b32.xlu0 %v345, 32
    %v632 = vpop.permute.xlu0 %631
    %633 = vrot.lane.b32.xlu0 %v348, 32
    %v634 = vpop.permute.xlu0 %633
    %635 = vrot.lane.b32.xlu0 %v351, 32
    %v636 = vpop.permute.xlu0 %635
    %637 = vrot.lane.b32.xlu0 %v354, 32
    %v638 = vpop.permute.xlu0 %637
    %643 = vrot.lane.b32.xlu0 %v481, 64
    %v644 = vpop.permute.xlu0 %643
    %645 = vrot.lane.b32.xlu0 %v484, 64
    %v646 = vpop.permute.xlu0 %645
    %647 = vrot.lane.b32.xlu0 %v487, 64
    %v648 = vpop.permute.xlu0 %647
    %649 = vrot.lane.b32.xlu0 %v490, 64
    %v650 = vpop.permute.xlu0 %649
    %655 = vrot.lane.b32.xlu0 %v617, 96
    %v656 = vpop.permute.xlu0 %655
    %657 = vrot.lane.b32.xlu0 %v620, 96
    %v658 = vpop.permute.xlu0 %657
    %659 = vrot.lane.b32.xlu0 %v623, 96
    %v660 = vpop.permute.xlu0 %659
    %661 = vrot.lane.b32.xlu0 %v626, 96
    %v662 = vpop.permute.xlu0 %661
    %v664 = vsel %vm238, %v208, %v632
    %v666 = vsel %vm238, %v211, %v634
    %v668 = vsel %vm238, %v214, %v636
    %v670 = vsel %vm238, %v217, %v638
    %vm671 = vcmask 523264
    %v673 = vsel %vm671, %v664, %v644
    %v675 = vsel %vm671, %v666, %v646
    %v677 = vsel %vm671, %v668, %v648
    %v679 = vsel %vm671, %v670, %v650
    %vm680 = vcmask 785408
    %v682 = vsel %vm680, %v673, %v656
    %v684 = vsel %vm680, %v675, %v658
    %v686 = vsel %vm680, %v677, %v660
    %v688 = vsel %vm680, %v679, %v662
    %v693 = vunpack.c.l.b16 %v682
    %v694 = vunpack.c.h.b16 %v682
    %v695 = vunpack.c.l.b16 %v684
    %v696 = vunpack.c.h.b16 %v684
    %v697 = vunpack.c.l.b16 %v686
    %v698 = vunpack.c.h.b16 %v686
    %v699 = vunpack.c.l.b16 %v688
    %v700 = vunpack.c.h.b16 %v688
    %v701 = vpack.c.b16 %v693, %v693
    %v702 = vpack.c.b16 %v694, %v694
    %v703 = vpack.c.b16 %v695, %v695
    %v704 = vpack.c.b16 %v696, %v696
    %v705 = vpack.c.b16 %v697, %v697
    %v706 = vpack.c.b16 %v698, %v698
    %v707 = vpack.c.b16 %v699, %v699
    %v708 = vpack.c.b16 %v700, %v700
    %717 = vst [vmem:[#allocation5] sm:$0xf] %v701
    %718 = vst [vmem:[#allocation5 + $0x4] sm:$0xf] %v702
    %719 = vst [vmem:[#allocation5 + $0x8] sm:$0xf] %v703
    %720 = vst [vmem:[#allocation5 + $0xc] sm:$0xf] %v704
    %721 = vst [vmem:[#allocation5 + $0x10] sm:$0xf] %v705
    %722 = vst [vmem:[#allocation5 + $0x14] sm:$0xf] %v706
    %723 = vst [vmem:[#allocation5 + $0x18] sm:$0xf] %v707
    %724 = vst [vmem:[#allocation5 + $0x1c] sm:$0xf] %v708
    %725 = vst.msk [vmem:[#allocation6] sm:$0xff] %vm238, %v598
    // Predicated region
    $region42: #{tpu_custom_call.1} parent=1 // pred_check
      _
    $region43: #{tpu_custom_call.1} parent=1 // pred_check_branch
      %727 = sbr.rel (0) target = $region45
    $region44: #{tpu_custom_call.1} parent=1 // pred_region
      %729 = vsyncadd [#allocation4], 0
      %s730 = sshll.u32 [#allocation5], 4
      %s731 = int_to_ptr.vmem [resolvable:$true] %s730
      %s732 = sshll.u32 %s9, 4
      %s733 = int_to_ptr.hbm [resolvable:$true] %s732
      %738 = dma.vmem_to_hbm [thread:$0]  %s731, 512, %s733, [#allocation4], 64, 64, 4
    $region45: #{tpu_custom_call.1} parent=1 // pred_fallthru
      _
    // Predicated region
    $region46: #{tpu_custom_call.1} parent=1 // pred_check
      _
    $region47: #{tpu_custom_call.1} parent=1 // pred_check_branch
      %740 = sbr.rel (0) target = $region49
    $region48: #{tpu_custom_call.1} parent=1 // pred_region
      %742 = vsyncadd [#allocation7], 0
      %s744 = sshll.u32 [#allocation6], 4
      %s745 = int_to_ptr.vmem [resolvable:$true] %s744
      %s746 = sshll.u32 %s10, 4
      %s747 = int_to_ptr.hbm [resolvable:$true] %s746
      %749 = dma.vmem_to_hbm [thread:$0]  %s745, 128, %s747, [#allocation7]
    $region49: #{tpu_custom_call.1} parent=1 // pred_fallthru
      _
    // Predicated region
    $region50: #{tpu_custom_call.1} parent=1 // pred_check
      _
    $region51: #{tpu_custom_call.1} parent=1 // pred_check_branch
      %751 = sbr.rel (0) target = $region53
    $region52: #{tpu_custom_call.1} parent=1 // pred_region
      %753 = dma.done [#allocation4], 512
    $region53: #{tpu_custom_call.1} parent=1 // pred_fallthru
      _
    // Predicated region
    $region54: #{tpu_custom_call.1} parent=1 // pred_check
      _
    $region55: #{tpu_custom_call.1} parent=1 // pred_check_branch
      %755 = sbr.rel (0) target = $region57
    $region56: #{tpu_custom_call.1} parent=1 // pred_region
      %757 = dma.done [#allocation7], 128
    $region57: #{tpu_custom_call.1} parent=1 // pred_fallthru
      _
    %758 = vsyncpa [#allocation3], 1
    %759 = vsyncpa [#allocation4], 1
    %760 = vsyncpa [#allocation7], 1

</llo_original>
